<compile_context>
chip_gen: v7x
topology: tpu7x:2x2x1
jax: 0.10.0
libtpu: 0.0.40
codegen_flags: <defaults>
</compile_context>

<pallas_src>
import jax
import jax.numpy as jnp
from jax.experimental import pallas as pl
from jax.experimental.pallas import tpu as pltpu

LOOK_BACK = 60
HIDDEN = 4
INPUT_DATA_DIM = 1  # batch must be 1 for the PyTorch forward's Linear(1,1) to typecheck


# ----------------------------- Pallas kernel ---------------------------------
def _fused_lstm_kernel(x_ref,
                       wih1_ref, whh1_ref, b1_ref,
                       wih2_ref, whh2_ref, b2_ref,
                       wfc_ref, bfc_ref, w13_ref, b13_ref,
                       out_ref):
    """Both branches at once (sublane-batched): 2-layer LSTM + FC head."""
    H = HIDDEN
    B2, S, _ = x_ref.shape            # B2 == 2 branches

    # ---- hoist all ref reads out of the time loop (stay vreg/VMEM-hot)
    x    = x_ref[...]                 # (2, S, LOOK_BACK)
    wih1 = wih1_ref[...]              # (2, LOOK_BACK, 4H)
    whh1 = whh1_ref[...]              # (2, H, 4H)
    b1   = b1_ref[...]                # (2, 4H)   (bih1 + bhh1, folded in wrapper)
    wih2 = wih2_ref[...]              # (2, H, 4H)
    whh2 = whh2_ref[...]              # (2, H, 4H)
    b2   = b2_ref[...]                # (2, 4H)
    wfc  = wfc_ref[...]               # (2, H)
    bfc  = bfc_ref[...]               # (2, 1, 1)
    w13  = w13_ref[...]               # (2, 1, 1)
    b13  = b13_ref[...]               # (2, 1, 1)

    # ---- hoisted layer-1 input projection for ALL timesteps & both branches.
    pre1_all = jnp.einsum("bsd,bdg->bsg", x, wih1,
                          preferred_element_type=jnp.float32) + b1[:, None, :]  # (2,S,4H)

    # Per-lane scale so ONE wide tanh yields all four gates:
    #   sigmoid(z) = 0.5*tanh(z/2) + 0.5   (i, f, o lanes scaled by 0.5; g lanes by 1.0)
    lane = jax.lax.broadcasted_iota(jnp.int32, (1, 4 * H), 1)
    gate_scale = jnp.where((lane >= 2 * H) & (lane < 3 * H),
                           1.0, 0.5).astype(jnp.float32)                        # (1, 4H)

    # Pre-slice recurrent weight rows ONCE (outside the time loop).
    whh1_rows = [whh1[:, j, :] for j in range(H)]   # each (2, 4H)
    whh2_rows = [whh2[:, j, :] for j in range(H)]
    wih2_rows = [wih2[:, j, :] for j in range(H)]

    def matvec(h, rows):
        # (2,H) x (2,H,4H) contraction done as H broadcast-FMAs on the VPU.
        acc = h[:, 0:1] * rows[0]
        for j in range(1, H):
            acc = acc + h[:, j:j + 1] * rows[j]
        return acc                                   # (2, 4H)

    def cell(pre, h_prev, c_prev, rows):
        # `pre` already contains the input projection + folded bias.
        gates = pre + matvec(h_prev, rows)           # (2, 4H)
        t = jnp.tanh(gates * gate_scale)             # one EUP push for all gates
        i = 0.5 * t[:, 0:H] + 0.5
        f = 0.5 * t[:, H:2 * H] + 0.5
        g = t[:, 2 * H:3 * H]
        o = 0.5 * t[:, 3 * H:4 * H] + 0.5
        c_new = f * c_prev + i * g
        h_new = o * jnp.tanh(c_new)
        return h_new, c_new

    # ---- recurrence: state stays in vregs; statically unrolled over time.
    # TODO(synk): for very long sequences switch to lax.fori_loop + (S,H) VMEM
    # scratch to bound code size; at this module's typical S the unroll is optimal.
    z = jnp.zeros((B2, H), jnp.float32)
    h1, c1, h2, c2 = z, z, z, z
    h2_steps = []
    for t in range(S):
        h1, c1 = cell(pre1_all[:, t, :], h1, c1, whh1_rows)
        pre2 = matvec(h1, wih2_rows) + b2
        h2, c2 = cell(pre2, h2, c2, whh2_rows)
        h2_steps.append(h2)

    # ---- epilogue (off the recurrence critical path): FC head + single store.
    hs = jnp.stack(h2_steps, axis=1)                                     # (2, S, H)
    fc = jnp.sum(hs * wfc[:, None, :], axis=-1, keepdims=True) + bfc     # (2, S, 1) = layer2
    out_ref[...] = fc * w13 + b13                                        # (2, S, 1) = layer13


# ------------------------------ wrapper ---------------------------------------
def _pack_branch(params):
    (wih1, whh1, bih1, bhh1,
     wih2, whh2, bih2, bhh2,
     wfc, bfc, w13, b13) = params
    return (wih1.T,                      # (LOOK_BACK, 4H)
            whh1.T,                      # (H, 4H)
            (bih1 + bhh1),               # (4H,)
            wih2.T,                      # (H, 4H)
            whh2.T,                      # (H, 4H)
            (bih2 + bhh2),               # (4H,)
            wfc.reshape(-1),             # (H,)
            bfc.reshape(1, 1),           # (1, 1)
            w13.reshape(1, 1),           # (1, 1)
            b13.reshape(1, 1))           # (1, 1)


@jax.jit
def lstm_forward(x_a, x_b, params_a, params_b):
    """Equivalent of lstm.forward(x_a, x_b): returns (xa, xb), each (S, 1)."""
    S, B, I = x_a.shape
    assert x_b.shape == x_a.shape
    assert B == 1 and I == LOOK_BACK

    pa = _pack_branch(params_a)
    pb = _pack_branch(params_b)
    # Stack the two branches along a leading (sublane-batched) axis.
    stacked = [jnp.stack([a, b], axis=0).astype(jnp.float32) for a, b in zip(pa, pb)]
    x = jnp.stack([x_a.reshape(S, I), x_b.reshape(S, I)], axis=0).astype(jnp.float32)  # (2,S,I)

    vmem = pl.BlockSpec(memory_space=pltpu.MemorySpace.VMEM)
    out = pl.pallas_call(
        _fused_lstm_kernel,
        out_shape=jax.ShapeDtypeStruct((2, S, 1), jnp.float32),
        in_specs=[vmem] * (1 + len(stacked)),
        out_specs=vmem,
    )(x, *stacked)

    # NOTE: self.layerOut (Linear(2,1)) is defined in __init__ but unused in forward.
    return out[0], out[1]


# --------------------------- parameter init -----------------------------------
def init_branch_params(key):
    ks = jax.random.split(key, 12)
    u = lambda k, shape, b: jax.random.uniform(k, shape, jnp.float32, -b, b)
    kl = 1.0 / jnp.sqrt(HIDDEN)           # LSTM init bound
    wih1 = u(ks[0], (4 * HIDDEN, LOOK_BACK), kl)
    whh1 = u(ks[1], (4 * HIDDEN, HIDDEN), kl)
    bih1 = u(ks[2], (4 * HIDDEN,), kl)
    bhh1 = u(ks[3], (4 * HIDDEN,), kl)
    wih2 = u(ks[4], (4 * HIDDEN, HIDDEN), kl)
    whh2 = u(ks[5], (4 * HIDDEN, HIDDEN), kl)
    bih2 = u(ks[6], (4 * HIDDEN,), kl)
    bhh2 = u(ks[7], (4 * HIDDEN,), kl)
    kfc = 1.0 / jnp.sqrt(HIDDEN)          # Linear(hidden, 1)
    wfc = u(ks[8], (1, HIDDEN), kfc)
    bfc = u(ks[9], (1,), kfc)
    k13 = 1.0 / jnp.sqrt(INPUT_DATA_DIM)  # Linear(1, 1)
    w13 = u(ks[10], (1, 1), k13)
    b13 = u(ks[11], (1,), k13)
    return (wih1, whh1, bih1, bhh1, wih2, whh2, bih2, bhh2, wfc, bfc, w13, b13)


# ------------------------- pure-JAX reference ----------------------------------
def lstm_branch_ref(x, params):
    (wih1, whh1, bih1, bhh1,
     wih2, whh2, bih2, bhh2,
     wfc, bfc, w13, b13) = params
    H = HIDDEN
    S, B, I = x.shape
    x2 = x.reshape(S, I).astype(jnp.float32)

    def cell(x_t, h, c, wih, whh, bih, bhh):
        g = x_t @ wih.T + h @ whh.T + bih + bhh
        i = jax.nn.sigmoid(g[:, 0:H])
        f = jax.nn.sigmoid(g[:, H:2 * H])
        gg = jnp.tanh(g[:, 2 * H:3 * H])
        o = jax.nn.sigmoid(g[:, 3 * H:4 * H])
        c_new = f * c + i * gg
        return o * jnp.tanh(c_new), c_new

    def step(carry, x_t):
        h1, c1, h2, c2 = carry
        h1, c1 = cell(x_t[None, :], h1, c1, wih1, whh1, bih1, bhh1)
        h2, c2 = cell(h1, h2, c2, wih2, whh2, bih2, bhh2)
        return (h1, c1, h2, c2), h2[0]

    z = jnp.zeros((1, H), jnp.float32)
    _, hs = jax.lax.scan(step, (z, z, z, z), x2)          # (S, H)
    fc = hs @ wfc.T + bfc                                  # (S, 1)  == layer2 then view(s,b)
    return fc @ w13.T + b13                                # (S, 1)  == layer13


# --------------------------------- main -----------------------------------------
if __name__ == "__main__":
    key = jax.random.PRNGKey(0)
    kxa, kxb, kpa, kpb = jax.random.split(key, 4)

    S, B = 8, 1   # batch must be 1 (PyTorch forward's Linear(1,1) on a (s,b) view)
    x_a = jax.random.normal(kxa, (S, B, LOOK_BACK), jnp.float32)
    x_b = jax.random.normal(kxb, (S, B, LOOK_BACK), jnp.float32)

    params_a = init_branch_params(kpa)
    params_b = init_branch_params(kpb)

    xa, xb = lstm_forward(x_a, x_b, params_a, params_b)
    jax.block_until_ready((xa, xb))

    xa_ref = lstm_branch_ref(x_a, params_a)
    xb_ref = lstm_branch_ref(x_b, params_b)
    assert xa.shape == (S, 1) and xb.shape == (S, 1)
    assert jnp.allclose(xa, xa_ref, atol=1e-3, rtol=1e-3), "branch A mismatch"
    assert jnp.allclose(xb, xb_ref, atol=1e-3, rtol=1e-3), "branch B mismatch"

    print("KERNEL_OK")
</pallas_src>

<mosaic_0001>
module attributes {stable_mosaic.version = 11 : i64} {
  func.func @_fused_lstm_kernel(%arg0: memref<2x8x60xf32, #tpu.memory_space<vmem>>, %arg1: memref<2x60x16xf32, #tpu.memory_space<vmem>>, %arg2: memref<2x4x16xf32, #tpu.memory_space<vmem>>, %arg3: memref<2x16xf32, #tpu.memory_space<vmem>>, %arg4: memref<2x4x16xf32, #tpu.memory_space<vmem>>, %arg5: memref<2x4x16xf32, #tpu.memory_space<vmem>>, %arg6: memref<2x16xf32, #tpu.memory_space<vmem>>, %arg7: memref<2x4xf32, #tpu.memory_space<vmem>>, %arg8: memref<2x1x1xf32, #tpu.memory_space<vmem>>, %arg9: memref<2x1x1xf32, #tpu.memory_space<vmem>>, %arg10: memref<2x1x1xf32, #tpu.memory_space<vmem>>, %arg11: memref<2x8x1xf32, #tpu.memory_space<vmem>>) attributes {dimension_semantics = [], scalar_prefetch = 0 : i64, scratch_operands = 0 : i64, tpu.core_type = #tpu.core_type<tc>} {
    %c0 = arith.constant 0 : index
    %c0_0 = arith.constant 0 : index
    %c0_1 = arith.constant 0 : index
    %0 = vector.load %arg0[%c0, %c0_0, %c0_1] : memref<2x8x60xf32, #tpu.memory_space<vmem>>, vector<2x8x60xf32>
    %c0_2 = arith.constant 0 : index
    %c0_3 = arith.constant 0 : index
    %c0_4 = arith.constant 0 : index
    %1 = vector.load %arg1[%c0_2, %c0_3, %c0_4] : memref<2x60x16xf32, #tpu.memory_space<vmem>>, vector<2x60x16xf32>
    %c0_5 = arith.constant 0 : index
    %c0_6 = arith.constant 0 : index
    %c0_7 = arith.constant 0 : index
    %2 = vector.load %arg2[%c0_5, %c0_6, %c0_7] : memref<2x4x16xf32, #tpu.memory_space<vmem>>, vector<2x4x16xf32>
    %c0_8 = arith.constant 0 : index
    %c0_9 = arith.constant 0 : index
    %3 = vector.load %arg3[%c0_8, %c0_9] : memref<2x16xf32, #tpu.memory_space<vmem>>, vector<2x16xf32>
    %c0_10 = arith.constant 0 : index
    %c0_11 = arith.constant 0 : index
    %c0_12 = arith.constant 0 : index
    %4 = vector.load %arg4[%c0_10, %c0_11, %c0_12] : memref<2x4x16xf32, #tpu.memory_space<vmem>>, vector<2x4x16xf32>
    %c0_13 = arith.constant 0 : index
    %c0_14 = arith.constant 0 : index
    %c0_15 = arith.constant 0 : index
    %5 = vector.load %arg5[%c0_13, %c0_14, %c0_15] : memref<2x4x16xf32, #tpu.memory_space<vmem>>, vector<2x4x16xf32>
    %c0_16 = arith.constant 0 : index
    %c0_17 = arith.constant 0 : index
    %6 = vector.load %arg6[%c0_16, %c0_17] : memref<2x16xf32, #tpu.memory_space<vmem>>, vector<2x16xf32>
    %c0_18 = arith.constant 0 : index
    %c0_19 = arith.constant 0 : index
    %7 = vector.load %arg7[%c0_18, %c0_19] : memref<2x4xf32, #tpu.memory_space<vmem>>, vector<2x4xf32>
    %c0_20 = arith.constant 0 : index
    %c0_21 = arith.constant 0 : index
    %c0_22 = arith.constant 0 : index
    %8 = vector.load %arg8[%c0_20, %c0_21, %c0_22] : memref<2x1x1xf32, #tpu.memory_space<vmem>>, vector<2x1x1xf32>
    %c0_23 = arith.constant 0 : index
    %c0_24 = arith.constant 0 : index
    %c0_25 = arith.constant 0 : index
    %9 = vector.load %arg9[%c0_23, %c0_24, %c0_25] : memref<2x1x1xf32, #tpu.memory_space<vmem>>, vector<2x1x1xf32>
    %c0_26 = arith.constant 0 : index
    %c0_27 = arith.constant 0 : index
    %c0_28 = arith.constant 0 : index
    %10 = vector.load %arg10[%c0_26, %c0_27, %c0_28] : memref<2x1x1xf32, #tpu.memory_space<vmem>>, vector<2x1x1xf32>
    "tpu.trace_start"() <{level = 10 : i32, message = "bsd,bdg->bsg"}> : () -> ()
    %cst = arith.constant dense<0.000000e+00> : vector<2x8x16xf32>
    %11 = tpu.matmul %0, %1, %cst {dimension_numbers = #tpu.dot_dimension_numbers<[2], [1], [1], [2], [0, 0, 0, 1, 1, 2], [0], [0]>} : vector<2x8x60xf32>, vector<2x60x16xf32>, vector<2x8x16xf32> -> vector<2x8x16xf32>
    "tpu.trace_stop"() : () -> ()
    %12 = vector.shape_cast %3 : vector<2x16xf32> to vector<2x1x16xf32>
    %13 = vector.broadcast %12 : vector<2x1x16xf32> to vector<2x8x16xf32>
    %14 = arith.addf %11, %13 : vector<2x8x16xf32>
    %15 = tpu.iota {dimensions = array<i32: 1>} : vector<1x16xi32>
    %c8_i32 = arith.constant 8 : i32
    %16 = vector.broadcast %c8_i32 : i32 to vector<1x16xi32>
    %17 = arith.cmpi sge, %15, %16 : vector<1x16xi32>
    %c12_i32 = arith.constant 12 : i32
    %18 = vector.broadcast %c12_i32 : i32 to vector<1x16xi32>
    %19 = arith.cmpi slt, %15, %18 : vector<1x16xi32>
    %20 = arith.andi %17, %19 : vector<1x16xi1>
    %cst_29 = arith.constant 1.000000e+00 : f32
    %cst_30 = arith.constant 5.000000e-01 : f32
    %21 = vector.broadcast %cst_29 : f32 to vector<1x16xf32>
    %22 = vector.broadcast %cst_30 : f32 to vector<1x16xf32>
    %23 = arith.select %20, %21, %22 : vector<1x16xi1>, vector<1x16xf32>
    %24 = vector.extract_strided_slice %2 {offsets = [0, 0, 0], sizes = [2, 1, 16], strides = [1, 1, 1]} : vector<2x4x16xf32> to vector<2x1x16xf32>
    %25 = vector.shape_cast %24 : vector<2x1x16xf32> to vector<2x16xf32>
    %26 = vector.extract_strided_slice %2 {offsets = [0, 1, 0], sizes = [2, 1, 16], strides = [1, 1, 1]} : vector<2x4x16xf32> to vector<2x1x16xf32>
    %27 = vector.shape_cast %26 : vector<2x1x16xf32> to vector<2x16xf32>
    %28 = vector.extract_strided_slice %2 {offsets = [0, 2, 0], sizes = [2, 1, 16], strides = [1, 1, 1]} : vector<2x4x16xf32> to vector<2x1x16xf32>
    %29 = vector.shape_cast %28 : vector<2x1x16xf32> to vector<2x16xf32>
    %30 = vector.extract_strided_slice %2 {offsets = [0, 3, 0], sizes = [2, 1, 16], strides = [1, 1, 1]} : vector<2x4x16xf32> to vector<2x1x16xf32>
    %31 = vector.shape_cast %30 : vector<2x1x16xf32> to vector<2x16xf32>
    %32 = vector.extract_strided_slice %5 {offsets = [0, 0, 0], sizes = [2, 1, 16], strides = [1, 1, 1]} : vector<2x4x16xf32> to vector<2x1x16xf32>
    %33 = vector.shape_cast %32 : vector<2x1x16xf32> to vector<2x16xf32>
    %34 = vector.extract_strided_slice %5 {offsets = [0, 1, 0], sizes = [2, 1, 16], strides = [1, 1, 1]} : vector<2x4x16xf32> to vector<2x1x16xf32>
    %35 = vector.shape_cast %34 : vector<2x1x16xf32> to vector<2x16xf32>
    %36 = vector.extract_strided_slice %5 {offsets = [0, 2, 0], sizes = [2, 1, 16], strides = [1, 1, 1]} : vector<2x4x16xf32> to vector<2x1x16xf32>
    %37 = vector.shape_cast %36 : vector<2x1x16xf32> to vector<2x16xf32>
    %38 = vector.extract_strided_slice %5 {offsets = [0, 3, 0], sizes = [2, 1, 16], strides = [1, 1, 1]} : vector<2x4x16xf32> to vector<2x1x16xf32>
    %39 = vector.shape_cast %38 : vector<2x1x16xf32> to vector<2x16xf32>
    %40 = vector.extract_strided_slice %4 {offsets = [0, 0, 0], sizes = [2, 1, 16], strides = [1, 1, 1]} : vector<2x4x16xf32> to vector<2x1x16xf32>
    %41 = vector.shape_cast %40 : vector<2x1x16xf32> to vector<2x16xf32>
    %42 = vector.extract_strided_slice %4 {offsets = [0, 1, 0], sizes = [2, 1, 16], strides = [1, 1, 1]} : vector<2x4x16xf32> to vector<2x1x16xf32>
    %43 = vector.shape_cast %42 : vector<2x1x16xf32> to vector<2x16xf32>
    %44 = vector.extract_strided_slice %4 {offsets = [0, 2, 0], sizes = [2, 1, 16], strides = [1, 1, 1]} : vector<2x4x16xf32> to vector<2x1x16xf32>
    %45 = vector.shape_cast %44 : vector<2x1x16xf32> to vector<2x16xf32>
    %46 = vector.extract_strided_slice %4 {offsets = [0, 3, 0], sizes = [2, 1, 16], strides = [1, 1, 1]} : vector<2x4x16xf32> to vector<2x1x16xf32>
    %47 = vector.shape_cast %46 : vector<2x1x16xf32> to vector<2x16xf32>
    %cst_31 = arith.constant 0.000000e+00 : f32
    %48 = vector.broadcast %cst_31 : f32 to vector<2x4xf32>
    %49 = vector.extract_strided_slice %14 {offsets = [0, 0, 0], sizes = [2, 1, 16], strides = [1, 1, 1]} : vector<2x8x16xf32> to vector<2x1x16xf32>
    %50 = vector.shape_cast %49 : vector<2x1x16xf32> to vector<2x16xf32>
    %51 = vector.extract_strided_slice %48 {offsets = [0, 0], sizes = [2, 1], strides = [1, 1]} : vector<2x4xf32> to vector<2x1xf32>
    %52 = vector.broadcast %51 : vector<2x1xf32> to vector<2x16xf32>
    %53 = arith.mulf %52, %25 : vector<2x16xf32>
    %54 = vector.extract_strided_slice %48 {offsets = [0, 1], sizes = [2, 1], strides = [1, 1]} : vector<2x4xf32> to vector<2x1xf32>
    %55 = vector.broadcast %54 : vector<2x1xf32> to vector<2x16xf32>
    %56 = arith.mulf %55, %27 : vector<2x16xf32>
    %57 = arith.addf %53, %56 : vector<2x16xf32>
    %58 = vector.extract_strided_slice %48 {offsets = [0, 2], sizes = [2, 1], strides = [1, 1]} : vector<2x4xf32> to vector<2x1xf32>
    %59 = vector.broadcast %58 : vector<2x1xf32> to vector<2x16xf32>
    %60 = arith.mulf %59, %29 : vector<2x16xf32>
    %61 = arith.addf %57, %60 : vector<2x16xf32>
    %62 = vector.extract_strided_slice %48 {offsets = [0, 3], sizes = [2, 1], strides = [1, 1]} : vector<2x4xf32> to vector<2x1xf32>
    %63 = vector.broadcast %62 : vector<2x1xf32> to vector<2x16xf32>
    %64 = arith.mulf %63, %31 : vector<2x16xf32>
    %65 = arith.addf %61, %64 : vector<2x16xf32>
    %66 = arith.addf %50, %65 : vector<2x16xf32>
    %67 = vector.broadcast %23 : vector<1x16xf32> to vector<2x16xf32>
    %68 = arith.mulf %66, %67 : vector<2x16xf32>
    %69 = math.tanh %68 : vector<2x16xf32>
    %70 = vector.extract_strided_slice %69 {offsets = [0, 0], sizes = [2, 4], strides = [1, 1]} : vector<2x16xf32> to vector<2x4xf32>
    %cst_32 = arith.constant 5.000000e-01 : f32
    %71 = vector.broadcast %cst_32 : f32 to vector<2x4xf32>
    %72 = arith.mulf %71, %70 : vector<2x4xf32>
    %cst_33 = arith.constant 5.000000e-01 : f32
    %73 = vector.broadcast %cst_33 : f32 to vector<2x4xf32>
    %74 = arith.addf %72, %73 : vector<2x4xf32>
    %75 = vector.extract_strided_slice %69 {offsets = [0, 4], sizes = [2, 4], strides = [1, 1]} : vector<2x16xf32> to vector<2x4xf32>
    %cst_34 = arith.constant 5.000000e-01 : f32
    %76 = vector.broadcast %cst_34 : f32 to vector<2x4xf32>
    %77 = arith.mulf %76, %75 : vector<2x4xf32>
    %cst_35 = arith.constant 5.000000e-01 : f32
    %78 = vector.broadcast %cst_35 : f32 to vector<2x4xf32>
    %79 = arith.addf %77, %78 : vector<2x4xf32>
    %80 = vector.extract_strided_slice %69 {offsets = [0, 8], sizes = [2, 4], strides = [1, 1]} : vector<2x16xf32> to vector<2x4xf32>
    %81 = vector.extract_strided_slice %69 {offsets = [0, 12], sizes = [2, 4], strides = [1, 1]} : vector<2x16xf32> to vector<2x4xf32>
    %cst_36 = arith.constant 5.000000e-01 : f32
    %82 = vector.broadcast %cst_36 : f32 to vector<2x4xf32>
    %83 = arith.mulf %82, %81 : vector<2x4xf32>
    %cst_37 = arith.constant 5.000000e-01 : f32
    %84 = vector.broadcast %cst_37 : f32 to vector<2x4xf32>
    %85 = arith.addf %83, %84 : vector<2x4xf32>
    %86 = arith.mulf %79, %48 : vector<2x4xf32>
    %87 = arith.mulf %74, %80 : vector<2x4xf32>
    %88 = arith.addf %86, %87 : vector<2x4xf32>
    %89 = math.tanh %88 : vector<2x4xf32>
    %90 = arith.mulf %85, %89 : vector<2x4xf32>
    %91 = vector.extract_strided_slice %90 {offsets = [0, 0], sizes = [2, 1], strides = [1, 1]} : vector<2x4xf32> to vector<2x1xf32>
    %92 = vector.broadcast %91 : vector<2x1xf32> to vector<2x16xf32>
    %93 = arith.mulf %92, %41 : vector<2x16xf32>
    %94 = vector.extract_strided_slice %90 {offsets = [0, 1], sizes = [2, 1], strides = [1, 1]} : vector<2x4xf32> to vector<2x1xf32>
    %95 = vector.broadcast %94 : vector<2x1xf32> to vector<2x16xf32>
    %96 = arith.mulf %95, %43 : vector<2x16xf32>
    %97 = arith.addf %93, %96 : vector<2x16xf32>
    %98 = vector.extract_strided_slice %90 {offsets = [0, 2], sizes = [2, 1], strides = [1, 1]} : vector<2x4xf32> to vector<2x1xf32>
    %99 = vector.broadcast %98 : vector<2x1xf32> to vector<2x16xf32>
    %100 = arith.mulf %99, %45 : vector<2x16xf32>
    %101 = arith.addf %97, %100 : vector<2x16xf32>
    %102 = vector.extract_strided_slice %90 {offsets = [0, 3], sizes = [2, 1], strides = [1, 1]} : vector<2x4xf32> to vector<2x1xf32>
    %103 = vector.broadcast %102 : vector<2x1xf32> to vector<2x16xf32>
    %104 = arith.mulf %103, %47 : vector<2x16xf32>
    %105 = arith.addf %101, %104 : vector<2x16xf32>
    %106 = arith.addf %105, %6 : vector<2x16xf32>
    %107 = vector.extract_strided_slice %48 {offsets = [0, 0], sizes = [2, 1], strides = [1, 1]} : vector<2x4xf32> to vector<2x1xf32>
    %108 = vector.broadcast %107 : vector<2x1xf32> to vector<2x16xf32>
    %109 = arith.mulf %108, %33 : vector<2x16xf32>
    %110 = vector.extract_strided_slice %48 {offsets = [0, 1], sizes = [2, 1], strides = [1, 1]} : vector<2x4xf32> to vector<2x1xf32>
    %111 = vector.broadcast %110 : vector<2x1xf32> to vector<2x16xf32>
    %112 = arith.mulf %111, %35 : vector<2x16xf32>
    %113 = arith.addf %109, %112 : vector<2x16xf32>
    %114 = vector.extract_strided_slice %48 {offsets = [0, 2], sizes = [2, 1], strides = [1, 1]} : vector<2x4xf32> to vector<2x1xf32>
    %115 = vector.broadcast %114 : vector<2x1xf32> to vector<2x16xf32>
    %116 = arith.mulf %115, %37 : vector<2x16xf32>
    %117 = arith.addf %113, %116 : vector<2x16xf32>
    %118 = vector.extract_strided_slice %48 {offsets = [0, 3], sizes = [2, 1], strides = [1, 1]} : vector<2x4xf32> to vector<2x1xf32>
    %119 = vector.broadcast %118 : vector<2x1xf32> to vector<2x16xf32>
    %120 = arith.mulf %119, %39 : vector<2x16xf32>
    %121 = arith.addf %117, %120 : vector<2x16xf32>
    %122 = arith.addf %106, %121 : vector<2x16xf32>
    %123 = vector.broadcast %23 : vector<1x16xf32> to vector<2x16xf32>
    %124 = arith.mulf %122, %123 : vector<2x16xf32>
    %125 = math.tanh %124 : vector<2x16xf32>
    %126 = vector.extract_strided_slice %125 {offsets = [0, 0], sizes = [2, 4], strides = [1, 1]} : vector<2x16xf32> to vector<2x4xf32>
    %cst_38 = arith.constant 5.000000e-01 : f32
    %127 = vector.broadcast %cst_38 : f32 to vector<2x4xf32>
    %128 = arith.mulf %127, %126 : vector<2x4xf32>
    %cst_39 = arith.constant 5.000000e-01 : f32
    %129 = vector.broadcast %cst_39 : f32 to vector<2x4xf32>
    %130 = arith.addf %128, %129 : vector<2x4xf32>
    %131 = vector.extract_strided_slice %125 {offsets = [0, 4], sizes = [2, 4], strides = [1, 1]} : vector<2x16xf32> to vector<2x4xf32>
    %cst_40 = arith.constant 5.000000e-01 : f32
    %132 = vector.broadcast %cst_40 : f32 to vector<2x4xf32>
    %133 = arith.mulf %132, %131 : vector<2x4xf32>
    %cst_41 = arith.constant 5.000000e-01 : f32
    %134 = vector.broadcast %cst_41 : f32 to vector<2x4xf32>
    %135 = arith.addf %133, %134 : vector<2x4xf32>
    %136 = vector.extract_strided_slice %125 {offsets = [0, 8], sizes = [2, 4], strides = [1, 1]} : vector<2x16xf32> to vector<2x4xf32>
    %137 = vector.extract_strided_slice %125 {offsets = [0, 12], sizes = [2, 4], strides = [1, 1]} : vector<2x16xf32> to vector<2x4xf32>
    %cst_42 = arith.constant 5.000000e-01 : f32
    %138 = vector.broadcast %cst_42 : f32 to vector<2x4xf32>
    %139 = arith.mulf %138, %137 : vector<2x4xf32>
    %cst_43 = arith.constant 5.000000e-01 : f32
    %140 = vector.broadcast %cst_43 : f32 to vector<2x4xf32>
    %141 = arith.addf %139, %140 : vector<2x4xf32>
    %142 = arith.mulf %135, %48 : vector<2x4xf32>
    %143 = arith.mulf %130, %136 : vector<2x4xf32>
    %144 = arith.addf %142, %143 : vector<2x4xf32>
    %145 = math.tanh %144 : vector<2x4xf32>
    %146 = arith.mulf %141, %145 : vector<2x4xf32>
    %147 = vector.extract_strided_slice %14 {offsets = [0, 1, 0], sizes = [2, 1, 16], strides = [1, 1, 1]} : vector<2x8x16xf32> to vector<2x1x16xf32>
    %148 = vector.shape_cast %147 : vector<2x1x16xf32> to vector<2x16xf32>
    %149 = vector.extract_strided_slice %90 {offsets = [0, 0], sizes = [2, 1], strides = [1, 1]} : vector<2x4xf32> to vector<2x1xf32>
    %150 = vector.broadcast %149 : vector<2x1xf32> to vector<2x16xf32>
    %151 = arith.mulf %150, %25 : vector<2x16xf32>
    %152 = vector.extract_strided_slice %90 {offsets = [0, 1], sizes = [2, 1], strides = [1, 1]} : vector<2x4xf32> to vector<2x1xf32>
    %153 = vector.broadcast %152 : vector<2x1xf32> to vector<2x16xf32>
    %154 = arith.mulf %153, %27 : vector<2x16xf32>
    %155 = arith.addf %151, %154 : vector<2x16xf32>
    %156 = vector.extract_strided_slice %90 {offsets = [0, 2], sizes = [2, 1], strides = [1, 1]} : vector<2x4xf32> to vector<2x1xf32>
    %157 = vector.broadcast %156 : vector<2x1xf32> to vector<2x16xf32>
    %158 = arith.mulf %157, %29 : vector<2x16xf32>
    %159 = arith.addf %155, %158 : vector<2x16xf32>
    %160 = vector.extract_strided_slice %90 {offsets = [0, 3], sizes = [2, 1], strides = [1, 1]} : vector<2x4xf32> to vector<2x1xf32>
    %161 = vector.broadcast %160 : vector<2x1xf32> to vector<2x16xf32>
    %162 = arith.mulf %161, %31 : vector<2x16xf32>
    %163 = arith.addf %159, %162 : vector<2x16xf32>
    %164 = arith.addf %148, %163 : vector<2x16xf32>
    %165 = vector.broadcast %23 : vector<1x16xf32> to vector<2x16xf32>
    %166 = arith.mulf %164, %165 : vector<2x16xf32>
    %167 = math.tanh %166 : vector<2x16xf32>
    %168 = vector.extract_strided_slice %167 {offsets = [0, 0], sizes = [2, 4], strides = [1, 1]} : vector<2x16xf32> to vector<2x4xf32>
    %cst_44 = arith.constant 5.000000e-01 : f32
    %169 = vector.broadcast %cst_44 : f32 to vector<2x4xf32>
    %170 = arith.mulf %169, %168 : vector<2x4xf32>
    %cst_45 = arith.constant 5.000000e-01 : f32
    %171 = vector.broadcast %cst_45 : f32 to vector<2x4xf32>
    %172 = arith.addf %170, %171 : vector<2x4xf32>
    %173 = vector.extract_strided_slice %167 {offsets = [0, 4], sizes = [2, 4], strides = [1, 1]} : vector<2x16xf32> to vector<2x4xf32>
    %cst_46 = arith.constant 5.000000e-01 : f32
    %174 = vector.broadcast %cst_46 : f32 to vector<2x4xf32>
    %175 = arith.mulf %174, %173 : vector<2x4xf32>
    %cst_47 = arith.constant 5.000000e-01 : f32
    %176 = vector.broadcast %cst_47 : f32 to vector<2x4xf32>
    %177 = arith.addf %175, %176 : vector<2x4xf32>
    %178 = vector.extract_strided_slice %167 {offsets = [0, 8], sizes = [2, 4], strides = [1, 1]} : vector<2x16xf32> to vector<2x4xf32>
    %179 = vector.extract_strided_slice %167 {offsets = [0, 12], sizes = [2, 4], strides = [1, 1]} : vector<2x16xf32> to vector<2x4xf32>
    %cst_48 = arith.constant 5.000000e-01 : f32
    %180 = vector.broadcast %cst_48 : f32 to vector<2x4xf32>
    %181 = arith.mulf %180, %179 : vector<2x4xf32>
    %cst_49 = arith.constant 5.000000e-01 : f32
    %182 = vector.broadcast %cst_49 : f32 to vector<2x4xf32>
    %183 = arith.addf %181, %182 : vector<2x4xf32>
    %184 = arith.mulf %177, %88 : vector<2x4xf32>
    %185 = arith.mulf %172, %178 : vector<2x4xf32>
    %186 = arith.addf %184, %185 : vector<2x4xf32>
    %187 = math.tanh %186 : vector<2x4xf32>
    %188 = arith.mulf %183, %187 : vector<2x4xf32>
    %189 = vector.extract_strided_slice %188 {offsets = [0, 0], sizes = [2, 1], strides = [1, 1]} : vector<2x4xf32> to vector<2x1xf32>
    %190 = vector.broadcast %189 : vector<2x1xf32> to vector<2x16xf32>
    %191 = arith.mulf %190, %41 : vector<2x16xf32>
    %192 = vector.extract_strided_slice %188 {offsets = [0, 1], sizes = [2, 1], strides = [1, 1]} : vector<2x4xf32> to vector<2x1xf32>
    %193 = vector.broadcast %192 : vector<2x1xf32> to vector<2x16xf32>
    %194 = arith.mulf %193, %43 : vector<2x16xf32>
    %195 = arith.addf %191, %194 : vector<2x16xf32>
    %196 = vector.extract_strided_slice %188 {offsets = [0, 2], sizes = [2, 1], strides = [1, 1]} : vector<2x4xf32> to vector<2x1xf32>
    %197 = vector.broadcast %196 : vector<2x1xf32> to vector<2x16xf32>
    %198 = arith.mulf %197, %45 : vector<2x16xf32>
    %199 = arith.addf %195, %198 : vector<2x16xf32>
    %200 = vector.extract_strided_slice %188 {offsets = [0, 3], sizes = [2, 1], strides = [1, 1]} : vector<2x4xf32> to vector<2x1xf32>
    %201 = vector.broadcast %200 : vector<2x1xf32> to vector<2x16xf32>
    %202 = arith.mulf %201, %47 : vector<2x16xf32>
    %203 = arith.addf %199, %202 : vector<2x16xf32>
    %204 = arith.addf %203, %6 : vector<2x16xf32>
    %205 = vector.extract_strided_slice %146 {offsets = [0, 0], sizes = [2, 1], strides = [1, 1]} : vector<2x4xf32> to vector<2x1xf32>
    %206 = vector.broadcast %205 : vector<2x1xf32> to vector<2x16xf32>
    %207 = arith.mulf %206, %33 : vector<2x16xf32>
    %208 = vector.extract_strided_slice %146 {offsets = [0, 1], sizes = [2, 1], strides = [1, 1]} : vector<2x4xf32> to vector<2x1xf32>
    %209 = vector.broadcast %208 : vector<2x1xf32> to vector<2x16xf32>
    %210 = arith.mulf %209, %35 : vector<2x16xf32>
    %211 = arith.addf %207, %210 : vector<2x16xf32>
    %212 = vector.extract_strided_slice %146 {offsets = [0, 2], sizes = [2, 1], strides = [1, 1]} : vector<2x4xf32> to vector<2x1xf32>
    %213 = vector.broadcast %212 : vector<2x1xf32> to vector<2x16xf32>
    %214 = arith.mulf %213, %37 : vector<2x16xf32>
    %215 = arith.addf %211, %214 : vector<2x16xf32>
    %216 = vector.extract_strided_slice %146 {offsets = [0, 3], sizes = [2, 1], strides = [1, 1]} : vector<2x4xf32> to vector<2x1xf32>
    %217 = vector.broadcast %216 : vector<2x1xf32> to vector<2x16xf32>
    %218 = arith.mulf %217, %39 : vector<2x16xf32>
    %219 = arith.addf %215, %218 : vector<2x16xf32>
    %220 = arith.addf %204, %219 : vector<2x16xf32>
    %221 = vector.broadcast %23 : vector<1x16xf32> to vector<2x16xf32>
    %222 = arith.mulf %220, %221 : vector<2x16xf32>
    %223 = math.tanh %222 : vector<2x16xf32>
    %224 = vector.extract_strided_slice %223 {offsets = [0, 0], sizes = [2, 4], strides = [1, 1]} : vector<2x16xf32> to vector<2x4xf32>
    %cst_50 = arith.constant 5.000000e-01 : f32
    %225 = vector.broadcast %cst_50 : f32 to vector<2x4xf32>
    %226 = arith.mulf %225, %224 : vector<2x4xf32>
    %cst_51 = arith.constant 5.000000e-01 : f32
    %227 = vector.broadcast %cst_51 : f32 to vector<2x4xf32>
    %228 = arith.addf %226, %227 : vector<2x4xf32>
    %229 = vector.extract_strided_slice %223 {offsets = [0, 4], sizes = [2, 4], strides = [1, 1]} : vector<2x16xf32> to vector<2x4xf32>
    %cst_52 = arith.constant 5.000000e-01 : f32
    %230 = vector.broadcast %cst_52 : f32 to vector<2x4xf32>
    %231 = arith.mulf %230, %229 : vector<2x4xf32>
    %cst_53 = arith.constant 5.000000e-01 : f32
    %232 = vector.broadcast %cst_53 : f32 to vector<2x4xf32>
    %233 = arith.addf %231, %232 : vector<2x4xf32>
    %234 = vector.extract_strided_slice %223 {offsets = [0, 8], sizes = [2, 4], strides = [1, 1]} : vector<2x16xf32> to vector<2x4xf32>
    %235 = vector.extract_strided_slice %223 {offsets = [0, 12], sizes = [2, 4], strides = [1, 1]} : vector<2x16xf32> to vector<2x4xf32>
    %cst_54 = arith.constant 5.000000e-01 : f32
    %236 = vector.broadcast %cst_54 : f32 to vector<2x4xf32>
    %237 = arith.mulf %236, %235 : vector<2x4xf32>
    %cst_55 = arith.constant 5.000000e-01 : f32
    %238 = vector.broadcast %cst_55 : f32 to vector<2x4xf32>
    %239 = arith.addf %237, %238 : vector<2x4xf32>
    %240 = arith.mulf %233, %144 : vector<2x4xf32>
    %241 = arith.mulf %228, %234 : vector<2x4xf32>
    %242 = arith.addf %240, %241 : vector<2x4xf32>
    %243 = math.tanh %242 : vector<2x4xf32>
    %244 = arith.mulf %239, %243 : vector<2x4xf32>
    %245 = vector.extract_strided_slice %14 {offsets = [0, 2, 0], sizes = [2, 1, 16], strides = [1, 1, 1]} : vector<2x8x16xf32> to vector<2x1x16xf32>
    %246 = vector.shape_cast %245 : vector<2x1x16xf32> to vector<2x16xf32>
    %247 = vector.extract_strided_slice %188 {offsets = [0, 0], sizes = [2, 1], strides = [1, 1]} : vector<2x4xf32> to vector<2x1xf32>
    %248 = vector.broadcast %247 : vector<2x1xf32> to vector<2x16xf32>
    %249 = arith.mulf %248, %25 : vector<2x16xf32>
    %250 = vector.extract_strided_slice %188 {offsets = [0, 1], sizes = [2, 1], strides = [1, 1]} : vector<2x4xf32> to vector<2x1xf32>
    %251 = vector.broadcast %250 : vector<2x1xf32> to vector<2x16xf32>
    %252 = arith.mulf %251, %27 : vector<2x16xf32>
    %253 = arith.addf %249, %252 : vector<2x16xf32>
    %254 = vector.extract_strided_slice %188 {offsets = [0, 2], sizes = [2, 1], strides = [1, 1]} : vector<2x4xf32> to vector<2x1xf32>
    %255 = vector.broadcast %254 : vector<2x1xf32> to vector<2x16xf32>
    %256 = arith.mulf %255, %29 : vector<2x16xf32>
    %257 = arith.addf %253, %256 : vector<2x16xf32>
    %258 = vector.extract_strided_slice %188 {offsets = [0, 3], sizes = [2, 1], strides = [1, 1]} : vector<2x4xf32> to vector<2x1xf32>
    %259 = vector.broadcast %258 : vector<2x1xf32> to vector<2x16xf32>
    %260 = arith.mulf %259, %31 : vector<2x16xf32>
    %261 = arith.addf %257, %260 : vector<2x16xf32>
    %262 = arith.addf %246, %261 : vector<2x16xf32>
    %263 = vector.broadcast %23 : vector<1x16xf32> to vector<2x16xf32>
    %264 = arith.mulf %262, %263 : vector<2x16xf32>
    %265 = math.tanh %264 : vector<2x16xf32>
    %266 = vector.extract_strided_slice %265 {offsets = [0, 0], sizes = [2, 4], strides = [1, 1]} : vector<2x16xf32> to vector<2x4xf32>
    %cst_56 = arith.constant 5.000000e-01 : f32
    %267 = vector.broadcast %cst_56 : f32 to vector<2x4xf32>
    %268 = arith.mulf %267, %266 : vector<2x4xf32>
    %cst_57 = arith.constant 5.000000e-01 : f32
    %269 = vector.broadcast %cst_57 : f32 to vector<2x4xf32>
    %270 = arith.addf %268, %269 : vector<2x4xf32>
    %271 = vector.extract_strided_slice %265 {offsets = [0, 4], sizes = [2, 4], strides = [1, 1]} : vector<2x16xf32> to vector<2x4xf32>
    %cst_58 = arith.constant 5.000000e-01 : f32
    %272 = vector.broadcast %cst_58 : f32 to vector<2x4xf32>
    %273 = arith.mulf %272, %271 : vector<2x4xf32>
    %cst_59 = arith.constant 5.000000e-01 : f32
    %274 = vector.broadcast %cst_59 : f32 to vector<2x4xf32>
    %275 = arith.addf %273, %274 : vector<2x4xf32>
    %276 = vector.extract_strided_slice %265 {offsets = [0, 8], sizes = [2, 4], strides = [1, 1]} : vector<2x16xf32> to vector<2x4xf32>
    %277 = vector.extract_strided_slice %265 {offsets = [0, 12], sizes = [2, 4], strides = [1, 1]} : vector<2x16xf32> to vector<2x4xf32>
    %cst_60 = arith.constant 5.000000e-01 : f32
    %278 = vector.broadcast %cst_60 : f32 to vector<2x4xf32>
    %279 = arith.mulf %278, %277 : vector<2x4xf32>
    %cst_61 = arith.constant 5.000000e-01 : f32
    %280 = vector.broadcast %cst_61 : f32 to vector<2x4xf32>
    %281 = arith.addf %279, %280 : vector<2x4xf32>
    %282 = arith.mulf %275, %186 : vector<2x4xf32>
    %283 = arith.mulf %270, %276 : vector<2x4xf32>
    %284 = arith.addf %282, %283 : vector<2x4xf32>
    %285 = math.tanh %284 : vector<2x4xf32>
    %286 = arith.mulf %281, %285 : vector<2x4xf32>
    %287 = vector.extract_strided_slice %286 {offsets = [0, 0], sizes = [2, 1], strides = [1, 1]} : vector<2x4xf32> to vector<2x1xf32>
    %288 = vector.broadcast %287 : vector<2x1xf32> to vector<2x16xf32>
    %289 = arith.mulf %288, %41 : vector<2x16xf32>
    %290 = vector.extract_strided_slice %286 {offsets = [0, 1], sizes = [2, 1], strides = [1, 1]} : vector<2x4xf32> to vector<2x1xf32>
    %291 = vector.broadcast %290 : vector<2x1xf32> to vector<2x16xf32>
    %292 = arith.mulf %291, %43 : vector<2x16xf32>
    %293 = arith.addf %289, %292 : vector<2x16xf32>
    %294 = vector.extract_strided_slice %286 {offsets = [0, 2], sizes = [2, 1], strides = [1, 1]} : vector<2x4xf32> to vector<2x1xf32>
    %295 = vector.broadcast %294 : vector<2x1xf32> to vector<2x16xf32>
    %296 = arith.mulf %295, %45 : vector<2x16xf32>
    %297 = arith.addf %293, %296 : vector<2x16xf32>
    %298 = vector.extract_strided_slice %286 {offsets = [0, 3], sizes = [2, 1], strides = [1, 1]} : vector<2x4xf32> to vector<2x1xf32>
    %299 = vector.broadcast %298 : vector<2x1xf32> to vector<2x16xf32>
    %300 = arith.mulf %299, %47 : vector<2x16xf32>
    %301 = arith.addf %297, %300 : vector<2x16xf32>
    %302 = arith.addf %301, %6 : vector<2x16xf32>
    %303 = vector.extract_strided_slice %244 {offsets = [0, 0], sizes = [2, 1], strides = [1, 1]} : vector<2x4xf32> to vector<2x1xf32>
    %304 = vector.broadcast %303 : vector<2x1xf32> to vector<2x16xf32>
    %305 = arith.mulf %304, %33 : vector<2x16xf32>
    %306 = vector.extract_strided_slice %244 {offsets = [0, 1], sizes = [2, 1], strides = [1, 1]} : vector<2x4xf32> to vector<2x1xf32>
    %307 = vector.broadcast %306 : vector<2x1xf32> to vector<2x16xf32>
    %308 = arith.mulf %307, %35 : vector<2x16xf32>
    %309 = arith.addf %305, %308 : vector<2x16xf32>
    %310 = vector.extract_strided_slice %244 {offsets = [0, 2], sizes = [2, 1], strides = [1, 1]} : vector<2x4xf32> to vector<2x1xf32>
    %311 = vector.broadcast %310 : vector<2x1xf32> to vector<2x16xf32>
    %312 = arith.mulf %311, %37 : vector<2x16xf32>
    %313 = arith.addf %309, %312 : vector<2x16xf32>
    %314 = vector.extract_strided_slice %244 {offsets = [0, 3], sizes = [2, 1], strides = [1, 1]} : vector<2x4xf32> to vector<2x1xf32>
    %315 = vector.broadcast %314 : vector<2x1xf32> to vector<2x16xf32>
    %316 = arith.mulf %315, %39 : vector<2x16xf32>
    %317 = arith.addf %313, %316 : vector<2x16xf32>
    %318 = arith.addf %302, %317 : vector<2x16xf32>
    %319 = vector.broadcast %23 : vector<1x16xf32> to vector<2x16xf32>
    %320 = arith.mulf %318, %319 : vector<2x16xf32>
    %321 = math.tanh %320 : vector<2x16xf32>
    %322 = vector.extract_strided_slice %321 {offsets = [0, 0], sizes = [2, 4], strides = [1, 1]} : vector<2x16xf32> to vector<2x4xf32>
    %cst_62 = arith.constant 5.000000e-01 : f32
    %323 = vector.broadcast %cst_62 : f32 to vector<2x4xf32>
    %324 = arith.mulf %323, %322 : vector<2x4xf32>
    %cst_63 = arith.constant 5.000000e-01 : f32
    %325 = vector.broadcast %cst_63 : f32 to vector<2x4xf32>
    %326 = arith.addf %324, %325 : vector<2x4xf32>
    %327 = vector.extract_strided_slice %321 {offsets = [0, 4], sizes = [2, 4], strides = [1, 1]} : vector<2x16xf32> to vector<2x4xf32>
    %cst_64 = arith.constant 5.000000e-01 : f32
    %328 = vector.broadcast %cst_64 : f32 to vector<2x4xf32>
    %329 = arith.mulf %328, %327 : vector<2x4xf32>
    %cst_65 = arith.constant 5.000000e-01 : f32
    %330 = vector.broadcast %cst_65 : f32 to vector<2x4xf32>
    %331 = arith.addf %329, %330 : vector<2x4xf32>
    %332 = vector.extract_strided_slice %321 {offsets = [0, 8], sizes = [2, 4], strides = [1, 1]} : vector<2x16xf32> to vector<2x4xf32>
    %333 = vector.extract_strided_slice %321 {offsets = [0, 12], sizes = [2, 4], strides = [1, 1]} : vector<2x16xf32> to vector<2x4xf32>
    %cst_66 = arith.constant 5.000000e-01 : f32
    %334 = vector.broadcast %cst_66 : f32 to vector<2x4xf32>
    %335 = arith.mulf %334, %333 : vector<2x4xf32>
    %cst_67 = arith.constant 5.000000e-01 : f32
    %336 = vector.broadcast %cst_67 : f32 to vector<2x4xf32>
    %337 = arith.addf %335, %336 : vector<2x4xf32>
    %338 = arith.mulf %331, %242 : vector<2x4xf32>
    %339 = arith.mulf %326, %332 : vector<2x4xf32>
    %340 = arith.addf %338, %339 : vector<2x4xf32>
    %341 = math.tanh %340 : vector<2x4xf32>
    %342 = arith.mulf %337, %341 : vector<2x4xf32>
    %343 = vector.extract_strided_slice %14 {offsets = [0, 3, 0], sizes = [2, 1, 16], strides = [1, 1, 1]} : vector<2x8x16xf32> to vector<2x1x16xf32>
    %344 = vector.shape_cast %343 : vector<2x1x16xf32> to vector<2x16xf32>
    %345 = vector.extract_strided_slice %286 {offsets = [0, 0], sizes = [2, 1], strides = [1, 1]} : vector<2x4xf32> to vector<2x1xf32>
    %346 = vector.broadcast %345 : vector<2x1xf32> to vector<2x16xf32>
    %347 = arith.mulf %346, %25 : vector<2x16xf32>
    %348 = vector.extract_strided_slice %286 {offsets = [0, 1], sizes = [2, 1], strides = [1, 1]} : vector<2x4xf32> to vector<2x1xf32>
    %349 = vector.broadcast %348 : vector<2x1xf32> to vector<2x16xf32>
    %350 = arith.mulf %349, %27 : vector<2x16xf32>
    %351 = arith.addf %347, %350 : vector<2x16xf32>
    %352 = vector.extract_strided_slice %286 {offsets = [0, 2], sizes = [2, 1], strides = [1, 1]} : vector<2x4xf32> to vector<2x1xf32>
    %353 = vector.broadcast %352 : vector<2x1xf32> to vector<2x16xf32>
    %354 = arith.mulf %353, %29 : vector<2x16xf32>
    %355 = arith.addf %351, %354 : vector<2x16xf32>
    %356 = vector.extract_strided_slice %286 {offsets = [0, 3], sizes = [2, 1], strides = [1, 1]} : vector<2x4xf32> to vector<2x1xf32>
    %357 = vector.broadcast %356 : vector<2x1xf32> to vector<2x16xf32>
    %358 = arith.mulf %357, %31 : vector<2x16xf32>
    %359 = arith.addf %355, %358 : vector<2x16xf32>
    %360 = arith.addf %344, %359 : vector<2x16xf32>
    %361 = vector.broadcast %23 : vector<1x16xf32> to vector<2x16xf32>
    %362 = arith.mulf %360, %361 : vector<2x16xf32>
    %363 = math.tanh %362 : vector<2x16xf32>
    %364 = vector.extract_strided_slice %363 {offsets = [0, 0], sizes = [2, 4], strides = [1, 1]} : vector<2x16xf32> to vector<2x4xf32>
    %cst_68 = arith.constant 5.000000e-01 : f32
    %365 = vector.broadcast %cst_68 : f32 to vector<2x4xf32>
    %366 = arith.mulf %365, %364 : vector<2x4xf32>
    %cst_69 = arith.constant 5.000000e-01 : f32
    %367 = vector.broadcast %cst_69 : f32 to vector<2x4xf32>
    %368 = arith.addf %366, %367 : vector<2x4xf32>
    %369 = vector.extract_strided_slice %363 {offsets = [0, 4], sizes = [2, 4], strides = [1, 1]} : vector<2x16xf32> to vector<2x4xf32>
    %cst_70 = arith.constant 5.000000e-01 : f32
    %370 = vector.broadcast %cst_70 : f32 to vector<2x4xf32>
    %371 = arith.mulf %370, %369 : vector<2x4xf32>
    %cst_71 = arith.constant 5.000000e-01 : f32
    %372 = vector.broadcast %cst_71 : f32 to vector<2x4xf32>
    %373 = arith.addf %371, %372 : vector<2x4xf32>
    %374 = vector.extract_strided_slice %363 {offsets = [0, 8], sizes = [2, 4], strides = [1, 1]} : vector<2x16xf32> to vector<2x4xf32>
    %375 = vector.extract_strided_slice %363 {offsets = [0, 12], sizes = [2, 4], strides = [1, 1]} : vector<2x16xf32> to vector<2x4xf32>
    %cst_72 = arith.constant 5.000000e-01 : f32
    %376 = vector.broadcast %cst_72 : f32 to vector<2x4xf32>
    %377 = arith.mulf %376, %375 : vector<2x4xf32>
    %cst_73 = arith.constant 5.000000e-01 : f32
    %378 = vector.broadcast %cst_73 : f32 to vector<2x4xf32>
    %379 = arith.addf %377, %378 : vector<2x4xf32>
    %380 = arith.mulf %373, %284 : vector<2x4xf32>
    %381 = arith.mulf %368, %374 : vector<2x4xf32>
    %382 = arith.addf %380, %381 : vector<2x4xf32>
    %383 = math.tanh %382 : vector<2x4xf32>
    %384 = arith.mulf %379, %383 : vector<2x4xf32>
    %385 = vector.extract_strided_slice %384 {offsets = [0, 0], sizes = [2, 1], strides = [1, 1]} : vector<2x4xf32> to vector<2x1xf32>
    %386 = vector.broadcast %385 : vector<2x1xf32> to vector<2x16xf32>
    %387 = arith.mulf %386, %41 : vector<2x16xf32>
    %388 = vector.extract_strided_slice %384 {offsets = [0, 1], sizes = [2, 1], strides = [1, 1]} : vector<2x4xf32> to vector<2x1xf32>
    %389 = vector.broadcast %388 : vector<2x1xf32> to vector<2x16xf32>
    %390 = arith.mulf %389, %43 : vector<2x16xf32>
    %391 = arith.addf %387, %390 : vector<2x16xf32>
    %392 = vector.extract_strided_slice %384 {offsets = [0, 2], sizes = [2, 1], strides = [1, 1]} : vector<2x4xf32> to vector<2x1xf32>
    %393 = vector.broadcast %392 : vector<2x1xf32> to vector<2x16xf32>
    %394 = arith.mulf %393, %45 : vector<2x16xf32>
    %395 = arith.addf %391, %394 : vector<2x16xf32>
    %396 = vector.extract_strided_slice %384 {offsets = [0, 3], sizes = [2, 1], strides = [1, 1]} : vector<2x4xf32> to vector<2x1xf32>
    %397 = vector.broadcast %396 : vector<2x1xf32> to vector<2x16xf32>
    %398 = arith.mulf %397, %47 : vector<2x16xf32>
    %399 = arith.addf %395, %398 : vector<2x16xf32>
    %400 = arith.addf %399, %6 : vector<2x16xf32>
    %401 = vector.extract_strided_slice %342 {offsets = [0, 0], sizes = [2, 1], strides = [1, 1]} : vector<2x4xf32> to vector<2x1xf32>
    %402 = vector.broadcast %401 : vector<2x1xf32> to vector<2x16xf32>
    %403 = arith.mulf %402, %33 : vector<2x16xf32>
    %404 = vector.extract_strided_slice %342 {offsets = [0, 1], sizes = [2, 1], strides = [1, 1]} : vector<2x4xf32> to vector<2x1xf32>
    %405 = vector.broadcast %404 : vector<2x1xf32> to vector<2x16xf32>
    %406 = arith.mulf %405, %35 : vector<2x16xf32>
    %407 = arith.addf %403, %406 : vector<2x16xf32>
    %408 = vector.extract_strided_slice %342 {offsets = [0, 2], sizes = [2, 1], strides = [1, 1]} : vector<2x4xf32> to vector<2x1xf32>
    %409 = vector.broadcast %408 : vector<2x1xf32> to vector<2x16xf32>
    %410 = arith.mulf %409, %37 : vector<2x16xf32>
    %411 = arith.addf %407, %410 : vector<2x16xf32>
    %412 = vector.extract_strided_slice %342 {offsets = [0, 3], sizes = [2, 1], strides = [1, 1]} : vector<2x4xf32> to vector<2x1xf32>
    %413 = vector.broadcast %412 : vector<2x1xf32> to vector<2x16xf32>
    %414 = arith.mulf %413, %39 : vector<2x16xf32>
    %415 = arith.addf %411, %414 : vector<2x16xf32>
    %416 = arith.addf %400, %415 : vector<2x16xf32>
    %417 = vector.broadcast %23 : vector<1x16xf32> to vector<2x16xf32>
    %418 = arith.mulf %416, %417 : vector<2x16xf32>
    %419 = math.tanh %418 : vector<2x16xf32>
    %420 = vector.extract_strided_slice %419 {offsets = [0, 0], sizes = [2, 4], strides = [1, 1]} : vector<2x16xf32> to vector<2x4xf32>
    %cst_74 = arith.constant 5.000000e-01 : f32
    %421 = vector.broadcast %cst_74 : f32 to vector<2x4xf32>
    %422 = arith.mulf %421, %420 : vector<2x4xf32>
    %cst_75 = arith.constant 5.000000e-01 : f32
    %423 = vector.broadcast %cst_75 : f32 to vector<2x4xf32>
    %424 = arith.addf %422, %423 : vector<2x4xf32>
    %425 = vector.extract_strided_slice %419 {offsets = [0, 4], sizes = [2, 4], strides = [1, 1]} : vector<2x16xf32> to vector<2x4xf32>
    %cst_76 = arith.constant 5.000000e-01 : f32
    %426 = vector.broadcast %cst_76 : f32 to vector<2x4xf32>
    %427 = arith.mulf %426, %425 : vector<2x4xf32>
    %cst_77 = arith.constant 5.000000e-01 : f32
    %428 = vector.broadcast %cst_77 : f32 to vector<2x4xf32>
    %429 = arith.addf %427, %428 : vector<2x4xf32>
    %430 = vector.extract_strided_slice %419 {offsets = [0, 8], sizes = [2, 4], strides = [1, 1]} : vector<2x16xf32> to vector<2x4xf32>
    %431 = vector.extract_strided_slice %419 {offsets = [0, 12], sizes = [2, 4], strides = [1, 1]} : vector<2x16xf32> to vector<2x4xf32>
    %cst_78 = arith.constant 5.000000e-01 : f32
    %432 = vector.broadcast %cst_78 : f32 to vector<2x4xf32>
    %433 = arith.mulf %432, %431 : vector<2x4xf32>
    %cst_79 = arith.constant 5.000000e-01 : f32
    %434 = vector.broadcast %cst_79 : f32 to vector<2x4xf32>
    %435 = arith.addf %433, %434 : vector<2x4xf32>
    %436 = arith.mulf %429, %340 : vector<2x4xf32>
    %437 = arith.mulf %424, %430 : vector<2x4xf32>
    %438 = arith.addf %436, %437 : vector<2x4xf32>
    %439 = math.tanh %438 : vector<2x4xf32>
    %440 = arith.mulf %435, %439 : vector<2x4xf32>
    %441 = vector.extract_strided_slice %14 {offsets = [0, 4, 0], sizes = [2, 1, 16], strides = [1, 1, 1]} : vector<2x8x16xf32> to vector<2x1x16xf32>
    %442 = vector.shape_cast %441 : vector<2x1x16xf32> to vector<2x16xf32>
    %443 = vector.extract_strided_slice %384 {offsets = [0, 0], sizes = [2, 1], strides = [1, 1]} : vector<2x4xf32> to vector<2x1xf32>
    %444 = vector.broadcast %443 : vector<2x1xf32> to vector<2x16xf32>
    %445 = arith.mulf %444, %25 : vector<2x16xf32>
    %446 = vector.extract_strided_slice %384 {offsets = [0, 1], sizes = [2, 1], strides = [1, 1]} : vector<2x4xf32> to vector<2x1xf32>
    %447 = vector.broadcast %446 : vector<2x1xf32> to vector<2x16xf32>
    %448 = arith.mulf %447, %27 : vector<2x16xf32>
    %449 = arith.addf %445, %448 : vector<2x16xf32>
    %450 = vector.extract_strided_slice %384 {offsets = [0, 2], sizes = [2, 1], strides = [1, 1]} : vector<2x4xf32> to vector<2x1xf32>
    %451 = vector.broadcast %450 : vector<2x1xf32> to vector<2x16xf32>
    %452 = arith.mulf %451, %29 : vector<2x16xf32>
    %453 = arith.addf %449, %452 : vector<2x16xf32>
    %454 = vector.extract_strided_slice %384 {offsets = [0, 3], sizes = [2, 1], strides = [1, 1]} : vector<2x4xf32> to vector<2x1xf32>
    %455 = vector.broadcast %454 : vector<2x1xf32> to vector<2x16xf32>
    %456 = arith.mulf %455, %31 : vector<2x16xf32>
    %457 = arith.addf %453, %456 : vector<2x16xf32>
    %458 = arith.addf %442, %457 : vector<2x16xf32>
    %459 = vector.broadcast %23 : vector<1x16xf32> to vector<2x16xf32>
    %460 = arith.mulf %458, %459 : vector<2x16xf32>
    %461 = math.tanh %460 : vector<2x16xf32>
    %462 = vector.extract_strided_slice %461 {offsets = [0, 0], sizes = [2, 4], strides = [1, 1]} : vector<2x16xf32> to vector<2x4xf32>
    %cst_80 = arith.constant 5.000000e-01 : f32
    %463 = vector.broadcast %cst_80 : f32 to vector<2x4xf32>
    %464 = arith.mulf %463, %462 : vector<2x4xf32>
    %cst_81 = arith.constant 5.000000e-01 : f32
    %465 = vector.broadcast %cst_81 : f32 to vector<2x4xf32>
    %466 = arith.addf %464, %465 : vector<2x4xf32>
    %467 = vector.extract_strided_slice %461 {offsets = [0, 4], sizes = [2, 4], strides = [1, 1]} : vector<2x16xf32> to vector<2x4xf32>
    %cst_82 = arith.constant 5.000000e-01 : f32
    %468 = vector.broadcast %cst_82 : f32 to vector<2x4xf32>
    %469 = arith.mulf %468, %467 : vector<2x4xf32>
    %cst_83 = arith.constant 5.000000e-01 : f32
    %470 = vector.broadcast %cst_83 : f32 to vector<2x4xf32>
    %471 = arith.addf %469, %470 : vector<2x4xf32>
    %472 = vector.extract_strided_slice %461 {offsets = [0, 8], sizes = [2, 4], strides = [1, 1]} : vector<2x16xf32> to vector<2x4xf32>
    %473 = vector.extract_strided_slice %461 {offsets = [0, 12], sizes = [2, 4], strides = [1, 1]} : vector<2x16xf32> to vector<2x4xf32>
    %cst_84 = arith.constant 5.000000e-01 : f32
    %474 = vector.broadcast %cst_84 : f32 to vector<2x4xf32>
    %475 = arith.mulf %474, %473 : vector<2x4xf32>
    %cst_85 = arith.constant 5.000000e-01 : f32
    %476 = vector.broadcast %cst_85 : f32 to vector<2x4xf32>
    %477 = arith.addf %475, %476 : vector<2x4xf32>
    %478 = arith.mulf %471, %382 : vector<2x4xf32>
    %479 = arith.mulf %466, %472 : vector<2x4xf32>
    %480 = arith.addf %478, %479 : vector<2x4xf32>
    %481 = math.tanh %480 : vector<2x4xf32>
    %482 = arith.mulf %477, %481 : vector<2x4xf32>
    %483 = vector.extract_strided_slice %482 {offsets = [0, 0], sizes = [2, 1], strides = [1, 1]} : vector<2x4xf32> to vector<2x1xf32>
    %484 = vector.broadcast %483 : vector<2x1xf32> to vector<2x16xf32>
    %485 = arith.mulf %484, %41 : vector<2x16xf32>
    %486 = vector.extract_strided_slice %482 {offsets = [0, 1], sizes = [2, 1], strides = [1, 1]} : vector<2x4xf32> to vector<2x1xf32>
    %487 = vector.broadcast %486 : vector<2x1xf32> to vector<2x16xf32>
    %488 = arith.mulf %487, %43 : vector<2x16xf32>
    %489 = arith.addf %485, %488 : vector<2x16xf32>
    %490 = vector.extract_strided_slice %482 {offsets = [0, 2], sizes = [2, 1], strides = [1, 1]} : vector<2x4xf32> to vector<2x1xf32>
    %491 = vector.broadcast %490 : vector<2x1xf32> to vector<2x16xf32>
    %492 = arith.mulf %491, %45 : vector<2x16xf32>
    %493 = arith.addf %489, %492 : vector<2x16xf32>
    %494 = vector.extract_strided_slice %482 {offsets = [0, 3], sizes = [2, 1], strides = [1, 1]} : vector<2x4xf32> to vector<2x1xf32>
    %495 = vector.broadcast %494 : vector<2x1xf32> to vector<2x16xf32>
    %496 = arith.mulf %495, %47 : vector<2x16xf32>
    %497 = arith.addf %493, %496 : vector<2x16xf32>
    %498 = arith.addf %497, %6 : vector<2x16xf32>
    %499 = vector.extract_strided_slice %440 {offsets = [0, 0], sizes = [2, 1], strides = [1, 1]} : vector<2x4xf32> to vector<2x1xf32>
    %500 = vector.broadcast %499 : vector<2x1xf32> to vector<2x16xf32>
    %501 = arith.mulf %500, %33 : vector<2x16xf32>
    %502 = vector.extract_strided_slice %440 {offsets = [0, 1], sizes = [2, 1], strides = [1, 1]} : vector<2x4xf32> to vector<2x1xf32>
    %503 = vector.broadcast %502 : vector<2x1xf32> to vector<2x16xf32>
    %504 = arith.mulf %503, %35 : vector<2x16xf32>
    %505 = arith.addf %501, %504 : vector<2x16xf32>
    %506 = vector.extract_strided_slice %440 {offsets = [0, 2], sizes = [2, 1], strides = [1, 1]} : vector<2x4xf32> to vector<2x1xf32>
    %507 = vector.broadcast %506 : vector<2x1xf32> to vector<2x16xf32>
    %508 = arith.mulf %507, %37 : vector<2x16xf32>
    %509 = arith.addf %505, %508 : vector<2x16xf32>
    %510 = vector.extract_strided_slice %440 {offsets = [0, 3], sizes = [2, 1], strides = [1, 1]} : vector<2x4xf32> to vector<2x1xf32>
    %511 = vector.broadcast %510 : vector<2x1xf32> to vector<2x16xf32>
    %512 = arith.mulf %511, %39 : vector<2x16xf32>
    %513 = arith.addf %509, %512 : vector<2x16xf32>
    %514 = arith.addf %498, %513 : vector<2x16xf32>
    %515 = vector.broadcast %23 : vector<1x16xf32> to vector<2x16xf32>
    %516 = arith.mulf %514, %515 : vector<2x16xf32>
    %517 = math.tanh %516 : vector<2x16xf32>
    %518 = vector.extract_strided_slice %517 {offsets = [0, 0], sizes = [2, 4], strides = [1, 1]} : vector<2x16xf32> to vector<2x4xf32>
    %cst_86 = arith.constant 5.000000e-01 : f32
    %519 = vector.broadcast %cst_86 : f32 to vector<2x4xf32>
    %520 = arith.mulf %519, %518 : vector<2x4xf32>
    %cst_87 = arith.constant 5.000000e-01 : f32
    %521 = vector.broadcast %cst_87 : f32 to vector<2x4xf32>
    %522 = arith.addf %520, %521 : vector<2x4xf32>
    %523 = vector.extract_strided_slice %517 {offsets = [0, 4], sizes = [2, 4], strides = [1, 1]} : vector<2x16xf32> to vector<2x4xf32>
    %cst_88 = arith.constant 5.000000e-01 : f32
    %524 = vector.broadcast %cst_88 : f32 to vector<2x4xf32>
    %525 = arith.mulf %524, %523 : vector<2x4xf32>
    %cst_89 = arith.constant 5.000000e-01 : f32
    %526 = vector.broadcast %cst_89 : f32 to vector<2x4xf32>
    %527 = arith.addf %525, %526 : vector<2x4xf32>
    %528 = vector.extract_strided_slice %517 {offsets = [0, 8], sizes = [2, 4], strides = [1, 1]} : vector<2x16xf32> to vector<2x4xf32>
    %529 = vector.extract_strided_slice %517 {offsets = [0, 12], sizes = [2, 4], strides = [1, 1]} : vector<2x16xf32> to vector<2x4xf32>
    %cst_90 = arith.constant 5.000000e-01 : f32
    %530 = vector.broadcast %cst_90 : f32 to vector<2x4xf32>
    %531 = arith.mulf %530, %529 : vector<2x4xf32>
    %cst_91 = arith.constant 5.000000e-01 : f32
    %532 = vector.broadcast %cst_91 : f32 to vector<2x4xf32>
    %533 = arith.addf %531, %532 : vector<2x4xf32>
    %534 = arith.mulf %527, %438 : vector<2x4xf32>
    %535 = arith.mulf %522, %528 : vector<2x4xf32>
    %536 = arith.addf %534, %535 : vector<2x4xf32>
    %537 = math.tanh %536 : vector<2x4xf32>
    %538 = arith.mulf %533, %537 : vector<2x4xf32>
    %539 = vector.extract_strided_slice %14 {offsets = [0, 5, 0], sizes = [2, 1, 16], strides = [1, 1, 1]} : vector<2x8x16xf32> to vector<2x1x16xf32>
    %540 = vector.shape_cast %539 : vector<2x1x16xf32> to vector<2x16xf32>
    %541 = vector.extract_strided_slice %482 {offsets = [0, 0], sizes = [2, 1], strides = [1, 1]} : vector<2x4xf32> to vector<2x1xf32>
    %542 = vector.broadcast %541 : vector<2x1xf32> to vector<2x16xf32>
    %543 = arith.mulf %542, %25 : vector<2x16xf32>
    %544 = vector.extract_strided_slice %482 {offsets = [0, 1], sizes = [2, 1], strides = [1, 1]} : vector<2x4xf32> to vector<2x1xf32>
    %545 = vector.broadcast %544 : vector<2x1xf32> to vector<2x16xf32>
    %546 = arith.mulf %545, %27 : vector<2x16xf32>
    %547 = arith.addf %543, %546 : vector<2x16xf32>
    %548 = vector.extract_strided_slice %482 {offsets = [0, 2], sizes = [2, 1], strides = [1, 1]} : vector<2x4xf32> to vector<2x1xf32>
    %549 = vector.broadcast %548 : vector<2x1xf32> to vector<2x16xf32>
    %550 = arith.mulf %549, %29 : vector<2x16xf32>
    %551 = arith.addf %547, %550 : vector<2x16xf32>
    %552 = vector.extract_strided_slice %482 {offsets = [0, 3], sizes = [2, 1], strides = [1, 1]} : vector<2x4xf32> to vector<2x1xf32>
    %553 = vector.broadcast %552 : vector<2x1xf32> to vector<2x16xf32>
    %554 = arith.mulf %553, %31 : vector<2x16xf32>
    %555 = arith.addf %551, %554 : vector<2x16xf32>
    %556 = arith.addf %540, %555 : vector<2x16xf32>
    %557 = vector.broadcast %23 : vector<1x16xf32> to vector<2x16xf32>
    %558 = arith.mulf %556, %557 : vector<2x16xf32>
    %559 = math.tanh %558 : vector<2x16xf32>
    %560 = vector.extract_strided_slice %559 {offsets = [0, 0], sizes = [2, 4], strides = [1, 1]} : vector<2x16xf32> to vector<2x4xf32>
    %cst_92 = arith.constant 5.000000e-01 : f32
    %561 = vector.broadcast %cst_92 : f32 to vector<2x4xf32>
    %562 = arith.mulf %561, %560 : vector<2x4xf32>
    %cst_93 = arith.constant 5.000000e-01 : f32
    %563 = vector.broadcast %cst_93 : f32 to vector<2x4xf32>
    %564 = arith.addf %562, %563 : vector<2x4xf32>
    %565 = vector.extract_strided_slice %559 {offsets = [0, 4], sizes = [2, 4], strides = [1, 1]} : vector<2x16xf32> to vector<2x4xf32>
    %cst_94 = arith.constant 5.000000e-01 : f32
    %566 = vector.broadcast %cst_94 : f32 to vector<2x4xf32>
    %567 = arith.mulf %566, %565 : vector<2x4xf32>
    %cst_95 = arith.constant 5.000000e-01 : f32
    %568 = vector.broadcast %cst_95 : f32 to vector<2x4xf32>
    %569 = arith.addf %567, %568 : vector<2x4xf32>
    %570 = vector.extract_strided_slice %559 {offsets = [0, 8], sizes = [2, 4], strides = [1, 1]} : vector<2x16xf32> to vector<2x4xf32>
    %571 = vector.extract_strided_slice %559 {offsets = [0, 12], sizes = [2, 4], strides = [1, 1]} : vector<2x16xf32> to vector<2x4xf32>
    %cst_96 = arith.constant 5.000000e-01 : f32
    %572 = vector.broadcast %cst_96 : f32 to vector<2x4xf32>
    %573 = arith.mulf %572, %571 : vector<2x4xf32>
    %cst_97 = arith.constant 5.000000e-01 : f32
    %574 = vector.broadcast %cst_97 : f32 to vector<2x4xf32>
    %575 = arith.addf %573, %574 : vector<2x4xf32>
    %576 = arith.mulf %569, %480 : vector<2x4xf32>
    %577 = arith.mulf %564, %570 : vector<2x4xf32>
    %578 = arith.addf %576, %577 : vector<2x4xf32>
    %579 = math.tanh %578 : vector<2x4xf32>
    %580 = arith.mulf %575, %579 : vector<2x4xf32>
    %581 = vector.extract_strided_slice %580 {offsets = [0, 0], sizes = [2, 1], strides = [1, 1]} : vector<2x4xf32> to vector<2x1xf32>
    %582 = vector.broadcast %581 : vector<2x1xf32> to vector<2x16xf32>
    %583 = arith.mulf %582, %41 : vector<2x16xf32>
    %584 = vector.extract_strided_slice %580 {offsets = [0, 1], sizes = [2, 1], strides = [1, 1]} : vector<2x4xf32> to vector<2x1xf32>
    %585 = vector.broadcast %584 : vector<2x1xf32> to vector<2x16xf32>
    %586 = arith.mulf %585, %43 : vector<2x16xf32>
    %587 = arith.addf %583, %586 : vector<2x16xf32>
    %588 = vector.extract_strided_slice %580 {offsets = [0, 2], sizes = [2, 1], strides = [1, 1]} : vector<2x4xf32> to vector<2x1xf32>
    %589 = vector.broadcast %588 : vector<2x1xf32> to vector<2x16xf32>
    %590 = arith.mulf %589, %45 : vector<2x16xf32>
    %591 = arith.addf %587, %590 : vector<2x16xf32>
    %592 = vector.extract_strided_slice %580 {offsets = [0, 3], sizes = [2, 1], strides = [1, 1]} : vector<2x4xf32> to vector<2x1xf32>
    %593 = vector.broadcast %592 : vector<2x1xf32> to vector<2x16xf32>
    %594 = arith.mulf %593, %47 : vector<2x16xf32>
    %595 = arith.addf %591, %594 : vector<2x16xf32>
    %596 = arith.addf %595, %6 : vector<2x16xf32>
    %597 = vector.extract_strided_slice %538 {offsets = [0, 0], sizes = [2, 1], strides = [1, 1]} : vector<2x4xf32> to vector<2x1xf32>
    %598 = vector.broadcast %597 : vector<2x1xf32> to vector<2x16xf32>
    %599 = arith.mulf %598, %33 : vector<2x16xf32>
    %600 = vector.extract_strided_slice %538 {offsets = [0, 1], sizes = [2, 1], strides = [1, 1]} : vector<2x4xf32> to vector<2x1xf32>
    %601 = vector.broadcast %600 : vector<2x1xf32> to vector<2x16xf32>
    %602 = arith.mulf %601, %35 : vector<2x16xf32>
    %603 = arith.addf %599, %602 : vector<2x16xf32>
    %604 = vector.extract_strided_slice %538 {offsets = [0, 2], sizes = [2, 1], strides = [1, 1]} : vector<2x4xf32> to vector<2x1xf32>
    %605 = vector.broadcast %604 : vector<2x1xf32> to vector<2x16xf32>
    %606 = arith.mulf %605, %37 : vector<2x16xf32>
    %607 = arith.addf %603, %606 : vector<2x16xf32>
    %608 = vector.extract_strided_slice %538 {offsets = [0, 3], sizes = [2, 1], strides = [1, 1]} : vector<2x4xf32> to vector<2x1xf32>
    %609 = vector.broadcast %608 : vector<2x1xf32> to vector<2x16xf32>
    %610 = arith.mulf %609, %39 : vector<2x16xf32>
    %611 = arith.addf %607, %610 : vector<2x16xf32>
    %612 = arith.addf %596, %611 : vector<2x16xf32>
    %613 = vector.broadcast %23 : vector<1x16xf32> to vector<2x16xf32>
    %614 = arith.mulf %612, %613 : vector<2x16xf32>
    %615 = math.tanh %614 : vector<2x16xf32>
    %616 = vector.extract_strided_slice %615 {offsets = [0, 0], sizes = [2, 4], strides = [1, 1]} : vector<2x16xf32> to vector<2x4xf32>
    %cst_98 = arith.constant 5.000000e-01 : f32
    %617 = vector.broadcast %cst_98 : f32 to vector<2x4xf32>
    %618 = arith.mulf %617, %616 : vector<2x4xf32>
    %cst_99 = arith.constant 5.000000e-01 : f32
    %619 = vector.broadcast %cst_99 : f32 to vector<2x4xf32>
    %620 = arith.addf %618, %619 : vector<2x4xf32>
    %621 = vector.extract_strided_slice %615 {offsets = [0, 4], sizes = [2, 4], strides = [1, 1]} : vector<2x16xf32> to vector<2x4xf32>
    %cst_100 = arith.constant 5.000000e-01 : f32
    %622 = vector.broadcast %cst_100 : f32 to vector<2x4xf32>
    %623 = arith.mulf %622, %621 : vector<2x4xf32>
    %cst_101 = arith.constant 5.000000e-01 : f32
    %624 = vector.broadcast %cst_101 : f32 to vector<2x4xf32>
    %625 = arith.addf %623, %624 : vector<2x4xf32>
    %626 = vector.extract_strided_slice %615 {offsets = [0, 8], sizes = [2, 4], strides = [1, 1]} : vector<2x16xf32> to vector<2x4xf32>
    %627 = vector.extract_strided_slice %615 {offsets = [0, 12], sizes = [2, 4], strides = [1, 1]} : vector<2x16xf32> to vector<2x4xf32>
    %cst_102 = arith.constant 5.000000e-01 : f32
    %628 = vector.broadcast %cst_102 : f32 to vector<2x4xf32>
    %629 = arith.mulf %628, %627 : vector<2x4xf32>
    %cst_103 = arith.constant 5.000000e-01 : f32
    %630 = vector.broadcast %cst_103 : f32 to vector<2x4xf32>
    %631 = arith.addf %629, %630 : vector<2x4xf32>
    %632 = arith.mulf %625, %536 : vector<2x4xf32>
    %633 = arith.mulf %620, %626 : vector<2x4xf32>
    %634 = arith.addf %632, %633 : vector<2x4xf32>
    %635 = math.tanh %634 : vector<2x4xf32>
    %636 = arith.mulf %631, %635 : vector<2x4xf32>
    %637 = vector.extract_strided_slice %14 {offsets = [0, 6, 0], sizes = [2, 1, 16], strides = [1, 1, 1]} : vector<2x8x16xf32> to vector<2x1x16xf32>
    %638 = vector.shape_cast %637 : vector<2x1x16xf32> to vector<2x16xf32>
    %639 = vector.extract_strided_slice %580 {offsets = [0, 0], sizes = [2, 1], strides = [1, 1]} : vector<2x4xf32> to vector<2x1xf32>
    %640 = vector.broadcast %639 : vector<2x1xf32> to vector<2x16xf32>
    %641 = arith.mulf %640, %25 : vector<2x16xf32>
    %642 = vector.extract_strided_slice %580 {offsets = [0, 1], sizes = [2, 1], strides = [1, 1]} : vector<2x4xf32> to vector<2x1xf32>
    %643 = vector.broadcast %642 : vector<2x1xf32> to vector<2x16xf32>
    %644 = arith.mulf %643, %27 : vector<2x16xf32>
    %645 = arith.addf %641, %644 : vector<2x16xf32>
    %646 = vector.extract_strided_slice %580 {offsets = [0, 2], sizes = [2, 1], strides = [1, 1]} : vector<2x4xf32> to vector<2x1xf32>
    %647 = vector.broadcast %646 : vector<2x1xf32> to vector<2x16xf32>
    %648 = arith.mulf %647, %29 : vector<2x16xf32>
    %649 = arith.addf %645, %648 : vector<2x16xf32>
    %650 = vector.extract_strided_slice %580 {offsets = [0, 3], sizes = [2, 1], strides = [1, 1]} : vector<2x4xf32> to vector<2x1xf32>
    %651 = vector.broadcast %650 : vector<2x1xf32> to vector<2x16xf32>
    %652 = arith.mulf %651, %31 : vector<2x16xf32>
    %653 = arith.addf %649, %652 : vector<2x16xf32>
    %654 = arith.addf %638, %653 : vector<2x16xf32>
    %655 = vector.broadcast %23 : vector<1x16xf32> to vector<2x16xf32>
    %656 = arith.mulf %654, %655 : vector<2x16xf32>
    %657 = math.tanh %656 : vector<2x16xf32>
    %658 = vector.extract_strided_slice %657 {offsets = [0, 0], sizes = [2, 4], strides = [1, 1]} : vector<2x16xf32> to vector<2x4xf32>
    %cst_104 = arith.constant 5.000000e-01 : f32
    %659 = vector.broadcast %cst_104 : f32 to vector<2x4xf32>
    %660 = arith.mulf %659, %658 : vector<2x4xf32>
    %cst_105 = arith.constant 5.000000e-01 : f32
    %661 = vector.broadcast %cst_105 : f32 to vector<2x4xf32>
    %662 = arith.addf %660, %661 : vector<2x4xf32>
    %663 = vector.extract_strided_slice %657 {offsets = [0, 4], sizes = [2, 4], strides = [1, 1]} : vector<2x16xf32> to vector<2x4xf32>
    %cst_106 = arith.constant 5.000000e-01 : f32
    %664 = vector.broadcast %cst_106 : f32 to vector<2x4xf32>
    %665 = arith.mulf %664, %663 : vector<2x4xf32>
    %cst_107 = arith.constant 5.000000e-01 : f32
    %666 = vector.broadcast %cst_107 : f32 to vector<2x4xf32>
    %667 = arith.addf %665, %666 : vector<2x4xf32>
    %668 = vector.extract_strided_slice %657 {offsets = [0, 8], sizes = [2, 4], strides = [1, 1]} : vector<2x16xf32> to vector<2x4xf32>
    %669 = vector.extract_strided_slice %657 {offsets = [0, 12], sizes = [2, 4], strides = [1, 1]} : vector<2x16xf32> to vector<2x4xf32>
    %cst_108 = arith.constant 5.000000e-01 : f32
    %670 = vector.broadcast %cst_108 : f32 to vector<2x4xf32>
    %671 = arith.mulf %670, %669 : vector<2x4xf32>
    %cst_109 = arith.constant 5.000000e-01 : f32
    %672 = vector.broadcast %cst_109 : f32 to vector<2x4xf32>
    %673 = arith.addf %671, %672 : vector<2x4xf32>
    %674 = arith.mulf %667, %578 : vector<2x4xf32>
    %675 = arith.mulf %662, %668 : vector<2x4xf32>
    %676 = arith.addf %674, %675 : vector<2x4xf32>
    %677 = math.tanh %676 : vector<2x4xf32>
    %678 = arith.mulf %673, %677 : vector<2x4xf32>
    %679 = vector.extract_strided_slice %678 {offsets = [0, 0], sizes = [2, 1], strides = [1, 1]} : vector<2x4xf32> to vector<2x1xf32>
    %680 = vector.broadcast %679 : vector<2x1xf32> to vector<2x16xf32>
    %681 = arith.mulf %680, %41 : vector<2x16xf32>
    %682 = vector.extract_strided_slice %678 {offsets = [0, 1], sizes = [2, 1], strides = [1, 1]} : vector<2x4xf32> to vector<2x1xf32>
    %683 = vector.broadcast %682 : vector<2x1xf32> to vector<2x16xf32>
    %684 = arith.mulf %683, %43 : vector<2x16xf32>
    %685 = arith.addf %681, %684 : vector<2x16xf32>
    %686 = vector.extract_strided_slice %678 {offsets = [0, 2], sizes = [2, 1], strides = [1, 1]} : vector<2x4xf32> to vector<2x1xf32>
    %687 = vector.broadcast %686 : vector<2x1xf32> to vector<2x16xf32>
    %688 = arith.mulf %687, %45 : vector<2x16xf32>
    %689 = arith.addf %685, %688 : vector<2x16xf32>
    %690 = vector.extract_strided_slice %678 {offsets = [0, 3], sizes = [2, 1], strides = [1, 1]} : vector<2x4xf32> to vector<2x1xf32>
    %691 = vector.broadcast %690 : vector<2x1xf32> to vector<2x16xf32>
    %692 = arith.mulf %691, %47 : vector<2x16xf32>
    %693 = arith.addf %689, %692 : vector<2x16xf32>
    %694 = arith.addf %693, %6 : vector<2x16xf32>
    %695 = vector.extract_strided_slice %636 {offsets = [0, 0], sizes = [2, 1], strides = [1, 1]} : vector<2x4xf32> to vector<2x1xf32>
    %696 = vector.broadcast %695 : vector<2x1xf32> to vector<2x16xf32>
    %697 = arith.mulf %696, %33 : vector<2x16xf32>
    %698 = vector.extract_strided_slice %636 {offsets = [0, 1], sizes = [2, 1], strides = [1, 1]} : vector<2x4xf32> to vector<2x1xf32>
    %699 = vector.broadcast %698 : vector<2x1xf32> to vector<2x16xf32>
    %700 = arith.mulf %699, %35 : vector<2x16xf32>
    %701 = arith.addf %697, %700 : vector<2x16xf32>
    %702 = vector.extract_strided_slice %636 {offsets = [0, 2], sizes = [2, 1], strides = [1, 1]} : vector<2x4xf32> to vector<2x1xf32>
    %703 = vector.broadcast %702 : vector<2x1xf32> to vector<2x16xf32>
    %704 = arith.mulf %703, %37 : vector<2x16xf32>
    %705 = arith.addf %701, %704 : vector<2x16xf32>
    %706 = vector.extract_strided_slice %636 {offsets = [0, 3], sizes = [2, 1], strides = [1, 1]} : vector<2x4xf32> to vector<2x1xf32>
    %707 = vector.broadcast %706 : vector<2x1xf32> to vector<2x16xf32>
    %708 = arith.mulf %707, %39 : vector<2x16xf32>
    %709 = arith.addf %705, %708 : vector<2x16xf32>
    %710 = arith.addf %694, %709 : vector<2x16xf32>
    %711 = vector.broadcast %23 : vector<1x16xf32> to vector<2x16xf32>
    %712 = arith.mulf %710, %711 : vector<2x16xf32>
    %713 = math.tanh %712 : vector<2x16xf32>
    %714 = vector.extract_strided_slice %713 {offsets = [0, 0], sizes = [2, 4], strides = [1, 1]} : vector<2x16xf32> to vector<2x4xf32>
    %cst_110 = arith.constant 5.000000e-01 : f32
    %715 = vector.broadcast %cst_110 : f32 to vector<2x4xf32>
    %716 = arith.mulf %715, %714 : vector<2x4xf32>
    %cst_111 = arith.constant 5.000000e-01 : f32
    %717 = vector.broadcast %cst_111 : f32 to vector<2x4xf32>
    %718 = arith.addf %716, %717 : vector<2x4xf32>
    %719 = vector.extract_strided_slice %713 {offsets = [0, 4], sizes = [2, 4], strides = [1, 1]} : vector<2x16xf32> to vector<2x4xf32>
    %cst_112 = arith.constant 5.000000e-01 : f32
    %720 = vector.broadcast %cst_112 : f32 to vector<2x4xf32>
    %721 = arith.mulf %720, %719 : vector<2x4xf32>
    %cst_113 = arith.constant 5.000000e-01 : f32
    %722 = vector.broadcast %cst_113 : f32 to vector<2x4xf32>
    %723 = arith.addf %721, %722 : vector<2x4xf32>
    %724 = vector.extract_strided_slice %713 {offsets = [0, 8], sizes = [2, 4], strides = [1, 1]} : vector<2x16xf32> to vector<2x4xf32>
    %725 = vector.extract_strided_slice %713 {offsets = [0, 12], sizes = [2, 4], strides = [1, 1]} : vector<2x16xf32> to vector<2x4xf32>
    %cst_114 = arith.constant 5.000000e-01 : f32
    %726 = vector.broadcast %cst_114 : f32 to vector<2x4xf32>
    %727 = arith.mulf %726, %725 : vector<2x4xf32>
    %cst_115 = arith.constant 5.000000e-01 : f32
    %728 = vector.broadcast %cst_115 : f32 to vector<2x4xf32>
    %729 = arith.addf %727, %728 : vector<2x4xf32>
    %730 = arith.mulf %723, %634 : vector<2x4xf32>
    %731 = arith.mulf %718, %724 : vector<2x4xf32>
    %732 = arith.addf %730, %731 : vector<2x4xf32>
    %733 = math.tanh %732 : vector<2x4xf32>
    %734 = arith.mulf %729, %733 : vector<2x4xf32>
    %735 = vector.extract_strided_slice %14 {offsets = [0, 7, 0], sizes = [2, 1, 16], strides = [1, 1, 1]} : vector<2x8x16xf32> to vector<2x1x16xf32>
    %736 = vector.shape_cast %735 : vector<2x1x16xf32> to vector<2x16xf32>
    %737 = vector.extract_strided_slice %678 {offsets = [0, 0], sizes = [2, 1], strides = [1, 1]} : vector<2x4xf32> to vector<2x1xf32>
    %738 = vector.broadcast %737 : vector<2x1xf32> to vector<2x16xf32>
    %739 = arith.mulf %738, %25 : vector<2x16xf32>
    %740 = vector.extract_strided_slice %678 {offsets = [0, 1], sizes = [2, 1], strides = [1, 1]} : vector<2x4xf32> to vector<2x1xf32>
    %741 = vector.broadcast %740 : vector<2x1xf32> to vector<2x16xf32>
    %742 = arith.mulf %741, %27 : vector<2x16xf32>
    %743 = arith.addf %739, %742 : vector<2x16xf32>
    %744 = vector.extract_strided_slice %678 {offsets = [0, 2], sizes = [2, 1], strides = [1, 1]} : vector<2x4xf32> to vector<2x1xf32>
    %745 = vector.broadcast %744 : vector<2x1xf32> to vector<2x16xf32>
    %746 = arith.mulf %745, %29 : vector<2x16xf32>
    %747 = arith.addf %743, %746 : vector<2x16xf32>
    %748 = vector.extract_strided_slice %678 {offsets = [0, 3], sizes = [2, 1], strides = [1, 1]} : vector<2x4xf32> to vector<2x1xf32>
    %749 = vector.broadcast %748 : vector<2x1xf32> to vector<2x16xf32>
    %750 = arith.mulf %749, %31 : vector<2x16xf32>
    %751 = arith.addf %747, %750 : vector<2x16xf32>
    %752 = arith.addf %736, %751 : vector<2x16xf32>
    %753 = vector.broadcast %23 : vector<1x16xf32> to vector<2x16xf32>
    %754 = arith.mulf %752, %753 : vector<2x16xf32>
    %755 = math.tanh %754 : vector<2x16xf32>
    %756 = vector.extract_strided_slice %755 {offsets = [0, 0], sizes = [2, 4], strides = [1, 1]} : vector<2x16xf32> to vector<2x4xf32>
    %cst_116 = arith.constant 5.000000e-01 : f32
    %757 = vector.broadcast %cst_116 : f32 to vector<2x4xf32>
    %758 = arith.mulf %757, %756 : vector<2x4xf32>
    %cst_117 = arith.constant 5.000000e-01 : f32
    %759 = vector.broadcast %cst_117 : f32 to vector<2x4xf32>
    %760 = arith.addf %758, %759 : vector<2x4xf32>
    %761 = vector.extract_strided_slice %755 {offsets = [0, 4], sizes = [2, 4], strides = [1, 1]} : vector<2x16xf32> to vector<2x4xf32>
    %cst_118 = arith.constant 5.000000e-01 : f32
    %762 = vector.broadcast %cst_118 : f32 to vector<2x4xf32>
    %763 = arith.mulf %762, %761 : vector<2x4xf32>
    %cst_119 = arith.constant 5.000000e-01 : f32
    %764 = vector.broadcast %cst_119 : f32 to vector<2x4xf32>
    %765 = arith.addf %763, %764 : vector<2x4xf32>
    %766 = vector.extract_strided_slice %755 {offsets = [0, 8], sizes = [2, 4], strides = [1, 1]} : vector<2x16xf32> to vector<2x4xf32>
    %767 = vector.extract_strided_slice %755 {offsets = [0, 12], sizes = [2, 4], strides = [1, 1]} : vector<2x16xf32> to vector<2x4xf32>
    %cst_120 = arith.constant 5.000000e-01 : f32
    %768 = vector.broadcast %cst_120 : f32 to vector<2x4xf32>
    %769 = arith.mulf %768, %767 : vector<2x4xf32>
    %cst_121 = arith.constant 5.000000e-01 : f32
    %770 = vector.broadcast %cst_121 : f32 to vector<2x4xf32>
    %771 = arith.addf %769, %770 : vector<2x4xf32>
    %772 = arith.mulf %765, %676 : vector<2x4xf32>
    %773 = arith.mulf %760, %766 : vector<2x4xf32>
    %774 = arith.addf %772, %773 : vector<2x4xf32>
    %775 = math.tanh %774 : vector<2x4xf32>
    %776 = arith.mulf %771, %775 : vector<2x4xf32>
    %777 = vector.extract_strided_slice %776 {offsets = [0, 0], sizes = [2, 1], strides = [1, 1]} : vector<2x4xf32> to vector<2x1xf32>
    %778 = vector.broadcast %777 : vector<2x1xf32> to vector<2x16xf32>
    %779 = arith.mulf %778, %41 : vector<2x16xf32>
    %780 = vector.extract_strided_slice %776 {offsets = [0, 1], sizes = [2, 1], strides = [1, 1]} : vector<2x4xf32> to vector<2x1xf32>
    %781 = vector.broadcast %780 : vector<2x1xf32> to vector<2x16xf32>
    %782 = arith.mulf %781, %43 : vector<2x16xf32>
    %783 = arith.addf %779, %782 : vector<2x16xf32>
    %784 = vector.extract_strided_slice %776 {offsets = [0, 2], sizes = [2, 1], strides = [1, 1]} : vector<2x4xf32> to vector<2x1xf32>
    %785 = vector.broadcast %784 : vector<2x1xf32> to vector<2x16xf32>
    %786 = arith.mulf %785, %45 : vector<2x16xf32>
    %787 = arith.addf %783, %786 : vector<2x16xf32>
    %788 = vector.extract_strided_slice %776 {offsets = [0, 3], sizes = [2, 1], strides = [1, 1]} : vector<2x4xf32> to vector<2x1xf32>
    %789 = vector.broadcast %788 : vector<2x1xf32> to vector<2x16xf32>
    %790 = arith.mulf %789, %47 : vector<2x16xf32>
    %791 = arith.addf %787, %790 : vector<2x16xf32>
    %792 = arith.addf %791, %6 : vector<2x16xf32>
    %793 = vector.extract_strided_slice %734 {offsets = [0, 0], sizes = [2, 1], strides = [1, 1]} : vector<2x4xf32> to vector<2x1xf32>
    %794 = vector.broadcast %793 : vector<2x1xf32> to vector<2x16xf32>
    %795 = arith.mulf %794, %33 : vector<2x16xf32>
    %796 = vector.extract_strided_slice %734 {offsets = [0, 1], sizes = [2, 1], strides = [1, 1]} : vector<2x4xf32> to vector<2x1xf32>
    %797 = vector.broadcast %796 : vector<2x1xf32> to vector<2x16xf32>
    %798 = arith.mulf %797, %35 : vector<2x16xf32>
    %799 = arith.addf %795, %798 : vector<2x16xf32>
    %800 = vector.extract_strided_slice %734 {offsets = [0, 2], sizes = [2, 1], strides = [1, 1]} : vector<2x4xf32> to vector<2x1xf32>
    %801 = vector.broadcast %800 : vector<2x1xf32> to vector<2x16xf32>
    %802 = arith.mulf %801, %37 : vector<2x16xf32>
    %803 = arith.addf %799, %802 : vector<2x16xf32>
    %804 = vector.extract_strided_slice %734 {offsets = [0, 3], sizes = [2, 1], strides = [1, 1]} : vector<2x4xf32> to vector<2x1xf32>
    %805 = vector.broadcast %804 : vector<2x1xf32> to vector<2x16xf32>
    %806 = arith.mulf %805, %39 : vector<2x16xf32>
    %807 = arith.addf %803, %806 : vector<2x16xf32>
    %808 = arith.addf %792, %807 : vector<2x16xf32>
    %809 = vector.broadcast %23 : vector<1x16xf32> to vector<2x16xf32>
    %810 = arith.mulf %808, %809 : vector<2x16xf32>
    %811 = math.tanh %810 : vector<2x16xf32>
    %812 = vector.extract_strided_slice %811 {offsets = [0, 0], sizes = [2, 4], strides = [1, 1]} : vector<2x16xf32> to vector<2x4xf32>
    %cst_122 = arith.constant 5.000000e-01 : f32
    %813 = vector.broadcast %cst_122 : f32 to vector<2x4xf32>
    %814 = arith.mulf %813, %812 : vector<2x4xf32>
    %cst_123 = arith.constant 5.000000e-01 : f32
    %815 = vector.broadcast %cst_123 : f32 to vector<2x4xf32>
    %816 = arith.addf %814, %815 : vector<2x4xf32>
    %817 = vector.extract_strided_slice %811 {offsets = [0, 4], sizes = [2, 4], strides = [1, 1]} : vector<2x16xf32> to vector<2x4xf32>
    %cst_124 = arith.constant 5.000000e-01 : f32
    %818 = vector.broadcast %cst_124 : f32 to vector<2x4xf32>
    %819 = arith.mulf %818, %817 : vector<2x4xf32>
    %cst_125 = arith.constant 5.000000e-01 : f32
    %820 = vector.broadcast %cst_125 : f32 to vector<2x4xf32>
    %821 = arith.addf %819, %820 : vector<2x4xf32>
    %822 = vector.extract_strided_slice %811 {offsets = [0, 8], sizes = [2, 4], strides = [1, 1]} : vector<2x16xf32> to vector<2x4xf32>
    %823 = vector.extract_strided_slice %811 {offsets = [0, 12], sizes = [2, 4], strides = [1, 1]} : vector<2x16xf32> to vector<2x4xf32>
    %cst_126 = arith.constant 5.000000e-01 : f32
    %824 = vector.broadcast %cst_126 : f32 to vector<2x4xf32>
    %825 = arith.mulf %824, %823 : vector<2x4xf32>
    %cst_127 = arith.constant 5.000000e-01 : f32
    %826 = vector.broadcast %cst_127 : f32 to vector<2x4xf32>
    %827 = arith.addf %825, %826 : vector<2x4xf32>
    %828 = arith.mulf %821, %732 : vector<2x4xf32>
    %829 = arith.mulf %816, %822 : vector<2x4xf32>
    %830 = arith.addf %828, %829 : vector<2x4xf32>
    %831 = math.tanh %830 : vector<2x4xf32>
    %832 = arith.mulf %827, %831 : vector<2x4xf32>
    %833 = vector.shape_cast %146 : vector<2x4xf32> to vector<2x1x4xf32>
    %834 = vector.shape_cast %244 : vector<2x4xf32> to vector<2x1x4xf32>
    %835 = vector.shape_cast %342 : vector<2x4xf32> to vector<2x1x4xf32>
    %836 = vector.shape_cast %440 : vector<2x4xf32> to vector<2x1x4xf32>
    %837 = vector.shape_cast %538 : vector<2x4xf32> to vector<2x1x4xf32>
    %838 = vector.shape_cast %636 : vector<2x4xf32> to vector<2x1x4xf32>
    %839 = vector.shape_cast %734 : vector<2x4xf32> to vector<2x1x4xf32>
    %840 = vector.shape_cast %832 : vector<2x4xf32> to vector<2x1x4xf32>
    %841 = tpu.concatenate %833, %834, %835, %836, %837, %838, %839, %840 in 1 : vector<2x1x4xf32>, vector<2x1x4xf32>, vector<2x1x4xf32>, vector<2x1x4xf32>, vector<2x1x4xf32>, vector<2x1x4xf32>, vector<2x1x4xf32>, vector<2x1x4xf32> -> vector<2x8x4xf32>
    %842 = vector.shape_cast %7 : vector<2x4xf32> to vector<2x1x4xf32>
    %843 = vector.broadcast %842 : vector<2x1x4xf32> to vector<2x8x4xf32>
    %844 = arith.mulf %841, %843 : vector<2x8x4xf32>
    %cst_128 = arith.constant dense<0.000000e+00> : vector<2x8xf32>
    %845 = vector.multi_reduction <add>, %844, %cst_128 [2] : vector<2x8x4xf32> to vector<2x8xf32>
    %846 = vector.shape_cast %845 : vector<2x8xf32> to vector<2x8x1xf32>
    %847 = vector.broadcast %8 : vector<2x1x1xf32> to vector<2x8x1xf32>
    %848 = arith.addf %846, %847 : vector<2x8x1xf32>
    %849 = vector.broadcast %9 : vector<2x1x1xf32> to vector<2x8x1xf32>
    %850 = arith.mulf %848, %849 : vector<2x8x1xf32>
    %851 = vector.broadcast %10 : vector<2x1x1xf32> to vector<2x8x1xf32>
    %852 = arith.addf %850, %851 : vector<2x8x1xf32>
    %c0_129 = arith.constant 0 : index
    %c0_130 = arith.constant 0 : index
    %c0_131 = arith.constant 0 : index
    %853 = vector.load %arg11[%c0_129, %c0_130, %c0_131] : memref<2x8x1xf32, #tpu.memory_space<vmem>>, vector<2x8x1xf32>
    tpu.vector_store %arg11[%c0_129, %c0_130, %c0_131], %852 {strides = array<i32>} : memref<2x8x1xf32, #tpu.memory_space<vmem>>, vector<2x8x1xf32>,
    return
  }
}

</mosaic_0001>

<llo_original>
// kernel: lstm_forward.1
$region0: #{lstm_forward.1}
  #allocation0 [shape = 'u32[]', space=smem, size = 0x4, offset = 0x4, fixed_abs, tag = 'smem constant byte address 0x4 - core index']
  #allocation1 [shape = 'u32[144,128]{1,0:T(1,128)}', space=vmem, size = 0x12000, scoped, tag = 'internal scratch']
  %s0 = inlined_call_operand.vmem [shape: f32[2,8,60], index: 0, kind: input, shape index: {}]
  %s1 = inlined_call_operand.vmem [shape: f32[2,60,16], index: 1, kind: input, shape index: {}]
  %s2 = inlined_call_operand.vmem [shape: f32[2,4,16], index: 2, kind: input, shape index: {}]
  %s3 = inlined_call_operand.vmem [shape: f32[2,16], index: 3, kind: input, shape index: {}]
  %s4 = inlined_call_operand.vmem [shape: f32[2,4,16], index: 4, kind: input, shape index: {}]
  %s5 = inlined_call_operand.vmem [shape: f32[2,4,16], index: 5, kind: input, shape index: {}]
  %s6 = inlined_call_operand.vmem [shape: f32[2,16], index: 6, kind: input, shape index: {}]
  %s7 = inlined_call_operand.vmem [shape: f32[2,4], index: 7, kind: input, shape index: {}]
  %s8 = inlined_call_operand.vmem [shape: f32[2,1,1], index: 8, kind: input, shape index: {}]
  %s9 = inlined_call_operand.vmem [shape: f32[2,1,1], index: 9, kind: input, shape index: {}]
  %s10 = inlined_call_operand.vmem [shape: f32[2,1,1], index: 10, kind: input, shape index: {}]
  %s11 = inlined_call_operand.vmem [shape: f32[2,8,1], index: 11, kind: output, shape index: {}]
  %s12 = sld [smem:[#allocation0]]
  $region54: #{lstm_forward.1} parent=0
    _
  %s14 = ssub.s32 1, %s12
  %s15 = scalar_select 0, %s14, %s12
  // Predicated region
  $region2: #{lstm_forward.1} parent=0 // pred_check
    _
  $region3: #{lstm_forward.1} parent=0 // pred_check_branch
    %17 = sbr.rel (0) target = $region5
  $region4: #{lstm_forward.1} parent=0 // pred_region
    _
  $region5: #{lstm_forward.1} parent=0 // pred_fallthru
    _
  // Predicated region
  $region6: #{lstm_forward.1} parent=0 // pred_check
    _
  $region7: #{lstm_forward.1} parent=0 // pred_check_branch
    %19 = sbr.rel (0) target = $region9
  $region8: #{lstm_forward.1} parent=0 // pred_region
    _
  $region9: #{lstm_forward.1} parent=0 // pred_fallthru
    _
  // Predicated region
  $region10: #{lstm_forward.1} parent=0 // pred_check
    _
  $region11: #{lstm_forward.1} parent=0 // pred_check_branch
    %21 = sbr.rel (0) target = $region13
  $region12: #{lstm_forward.1} parent=0 // pred_region
    _
  $region13: #{lstm_forward.1} parent=0 // pred_fallthru
    _
  // Predicated region
  $region14: #{lstm_forward.1} parent=0 // pred_check
    _
  $region15: #{lstm_forward.1} parent=0 // pred_check_branch
    %23 = sbr.rel (0) target = $region17
  $region16: #{lstm_forward.1} parent=0 // pred_region
    _
  $region17: #{lstm_forward.1} parent=0 // pred_fallthru
    _
  // Predicated region
  $region18: #{lstm_forward.1} parent=0 // pred_check
    _
  $region19: #{lstm_forward.1} parent=0 // pred_check_branch
    %25 = sbr.rel (0) target = $region21
  $region20: #{lstm_forward.1} parent=0 // pred_region
    _
  $region21: #{lstm_forward.1} parent=0 // pred_fallthru
    _
  // Predicated region
  $region22: #{lstm_forward.1} parent=0 // pred_check
    _
  $region23: #{lstm_forward.1} parent=0 // pred_check_branch
    %27 = sbr.rel (0) target = $region25
  $region24: #{lstm_forward.1} parent=0 // pred_region
    _
  $region25: #{lstm_forward.1} parent=0 // pred_fallthru
    _
  // Predicated region
  $region26: #{lstm_forward.1} parent=0 // pred_check
    _
  $region27: #{lstm_forward.1} parent=0 // pred_check_branch
    %29 = sbr.rel (0) target = $region29
  $region28: #{lstm_forward.1} parent=0 // pred_region
    _
  $region29: #{lstm_forward.1} parent=0 // pred_fallthru
    _
  // Predicated region
  $region30: #{lstm_forward.1} parent=0 // pred_check
    _
  $region31: #{lstm_forward.1} parent=0 // pred_check_branch
    %31 = sbr.rel (0) target = $region33
  $region32: #{lstm_forward.1} parent=0 // pred_region
    _
  $region33: #{lstm_forward.1} parent=0 // pred_fallthru
    _
  // Predicated region
  $region34: #{lstm_forward.1} parent=0 // pred_check
    _
  $region35: #{lstm_forward.1} parent=0 // pred_check_branch
    %33 = sbr.rel (0) target = $region37
  $region36: #{lstm_forward.1} parent=0 // pred_region
    _
  $region37: #{lstm_forward.1} parent=0 // pred_fallthru
    _
  // Predicated region
  $region38: #{lstm_forward.1} parent=0 // pred_check
    _
  $region39: #{lstm_forward.1} parent=0 // pred_check_branch
    %35 = sbr.rel (0) target = $region41
  $region40: #{lstm_forward.1} parent=0 // pred_region
    _
  $region41: #{lstm_forward.1} parent=0 // pred_fallthru
    _
  // Predicated region
  $region42: #{lstm_forward.1} parent=0 // pred_check
    _
  $region43: #{lstm_forward.1} parent=0 // pred_check_branch
    %37 = sbr.rel (0) target = $region45
  $region44: #{lstm_forward.1} parent=0 // pred_region
    _
  $region45: #{lstm_forward.1} parent=0 // pred_fallthru
    _
  %v38 = vld [vmem:[%s0] sm:$0xff]
  %v39 = vld [vmem:[%s0 + $0x8] sm:$0xff]
  %v40 = vld [vmem:[%s1] sm:$0xff]
  %v41 = vld [vmem:[%s1 + $0x8] sm:$0xff]
  %v42 = vld [vmem:[%s1 + $0x10] sm:$0xff]
  %v43 = vld [vmem:[%s1 + $0x18] sm:$0xff]
  %v44 = vld [vmem:[%s1 + $0x20] sm:$0xff]
  %v45 = vld [vmem:[%s1 + $0x28] sm:$0xff]
  %v46 = vld [vmem:[%s1 + $0x30] sm:$0xff]
  %v47 = vld [vmem:[%s1 + $0x38] sm:$0xf]
  %v48 = vld [vmem:[%s1 + $0x40] sm:$0xff]
  %v49 = vld [vmem:[%s1 + $0x48] sm:$0xff]
  %v50 = vld [vmem:[%s1 + $0x50] sm:$0xff]
  %v51 = vld [vmem:[%s1 + $0x58] sm:$0xff]
  %v52 = vld [vmem:[%s1 + $0x60] sm:$0xff]
  %v53 = vld [vmem:[%s1 + $0x68] sm:$0xff]
  %v54 = vld [vmem:[%s1 + $0x70] sm:$0xff]
  %v55 = vld [vmem:[%s1 + $0x78] sm:$0xf]
  %v56 = vld [vmem:[%s2] sm:$0xf]
  %v57 = vld [vmem:[%s2 + $0x4] sm:$0xf]
  %v58 = vld [vmem:[%s3] sm:$0x3]
  %v59 = vld [vmem:[%s4] sm:$0xf]
  %v60 = vld [vmem:[%s4 + $0x4] sm:$0xf]
  %v61 = vld [vmem:[%s5] sm:$0xf]
  %v62 = vld [vmem:[%s5 + $0x4] sm:$0xf]
  %v63 = vld [vmem:[%s6] sm:$0x3]
  %v64 = vld [vmem:[%s7] sm:$0x3]
  %v65 = vld [vmem:[%s8] sm:$0x1]
  %v66 = vld [vmem:[%s8 + $0x1] sm:$0x1]
  %v67 = vld [vmem:[%s9] sm:$0x1]
  %v68 = vld [vmem:[%s9 + $0x1] sm:$0x1]
  %v69 = vld [vmem:[%s10] sm:$0x1]
  %v70 = vld [vmem:[%s10 + $0x1] sm:$0x1]
  %v73 = vunpack.c.l.s4 1966171168
  %v74 = vunpack.c.0.s8 %v73
  %v75 = vlaneseq
  %v76 = vshrl.u32 %v75, 7
  %v77 = vsub.s32 %v74, %v76
  %v78 = vrot.slane %v58, %v77
  %v79 = vcombine.high %v78, %v78
  %v81 = vunpack.c.l.s4 1966171168
  %v82 = vunpack.c.0.s8 %v81
  %v83 = vlaneseq
  %v84 = vshrl.u32 %v83, 7
  %v85 = vsub.s32 %v82, %v84
  %v86 = vrot.slane %v78, %v85
  %v88 = vunpack.c.l.s4 1966171168
  %v89 = vunpack.c.0.s8 %v88
  %v90 = vlaneseq
  %v91 = vshrl.u32 %v90, 7
  %v92 = vsub.s32 %v89, %v91
  %v93 = vrot.slane %v79, %v92
  %v94 = vlaneseq
  %v95 = vshrl.u32 %v94, 7
  %v96 = vsub.s32 0, %v95
  %v97 = vrot.slane %v86, %v96
  %v98 = vlaneseq
  %v99 = vshrl.u32 %v98, 7
  %v100 = vsub.s32 0, %v99
  %v101 = vrot.slane %v93, %v100
  %vm104 = vcmask 490496
  %v106 = vsel %vm104, %v38, 0
  %vm108 = vcmask 1043456
  %v110 = vsel %vm108, %v47, 0
  %112 = vmatprep.subr.mxu0 0.0
  %113 = vmatpush1.msra.mxu0 %v40
  %114 = vmatprep.subr.mxu0 0.0
  %115 = vmatpush1.msra.mxu0 %v41
  %116 = vmatprep.subr.mxu0 0.0
  %117 = vmatpush1.msra.mxu0 %v42
  %118 = vmatprep.subr.mxu0 0.0
  %119 = vmatpush1.msra.mxu0 %v43
  %120 = vmatprep.subr.mxu0 0.0
  %121 = vmatpush1.msra.mxu0 %v44
  %122 = vmatprep.subr.mxu0 0.0
  %123 = vmatpush1.msra.mxu0 %v45
  %124 = vmatprep.subr.mxu0 0.0
  %125 = vmatpush1.msra.mxu0 %v46
  %126 = vmatprep.subr.mxu0 0.0
  %127 = vmatpush1.msra.mxu0 %v110
  %128 = vmatprep.subr.mxu0 0.0
  %129 = vmatpush1.msra.mxu0 0.0
  %130 = vmatprep.subr.mxu0 0.0
  %131 = vmatpush1.msra.mxu0 0.0
  %132 = vmatprep.subr.mxu0 0.0
  %133 = vmatpush1.msra.mxu0 0.0
  %134 = vmatprep.subr.mxu0 0.0
  %135 = vmatpush1.msra.mxu0 0.0
  %136 = vmatprep.subr.mxu0 0.0
  %137 = vmatpush1.msra.mxu0 0.0
  %138 = vmatprep.subr.mxu0 0.0
  %139 = vmatpush1.msra.mxu0 0.0
  %140 = vmatprep.subr.mxu0 0.0
  %141 = vmatpush1.msra.mxu0 0.0
  %142 = vmatprep.subr.mxu0 0.0
  %143 = vmatpush1.msra.mxu0 0.0
  %144 = vmatprep.subr.mxu0 0.0
  %145 = vmatpush1.msra.mxu0 0.0
  %146 = vmatprep.subr.mxu0 0.0
  %147 = vmatpush1.msra.mxu0 0.0
  %148 = vmatprep.subr.mxu0 0.0
  %149 = vmatpush1.msra.mxu0 0.0
  %150 = vmatprep.subr.mxu0 0.0
  %151 = vmatpush1.msra.mxu0 0.0
  %152 = vmatprep.subr.mxu0 0.0
  %153 = vmatpush1.msra.mxu0 0.0
  %154 = vmatprep.subr.mxu0 0.0
  %155 = vmatpush1.msra.mxu0 0.0
  %156 = vmatprep.subr.mxu0 0.0
  %157 = vmatpush1.msra.mxu0 0.0
  %158 = vmatprep.subr.mxu0 0.0
  %159 = vmatpush1.msra.mxu0 0.0
  %160 = vmatprep.subr.mxu0 0.0
  %161 = vmatpush1.msra.mxu0 0.0
  %162 = vmatprep.subr.mxu0 0.0
  %163 = vmatpush1.msra.mxu0 0.0
  %164 = vmatprep.subr.mxu0 0.0
  %165 = vmatpush1.msra.mxu0 0.0
  %166 = vmatprep.subr.mxu0 0.0
  %167 = vmatpush1.msra.mxu0 0.0
  %168 = vmatprep.subr.mxu0 0.0
  %169 = vmatpush1.msra.mxu0 0.0
  %170 = vmatprep.subr.mxu0 0.0
  %171 = vmatpush1.msra.mxu0 0.0
  %172 = vmatprep.subr.mxu0 0.0
  %173 = vmatpush1.msra.mxu0 0.0
  %174 = vmatprep.subr.mxu0 0.0
  %175 = vmatpush1.msra.mxu0 0.0
  %176 = vmatprep.mubr.f32.mxu0 0.0
  %177 = vmatmul.mubr.f32.gmra.mrb[0].mxu0 %v106
  %v178 = vpop.f32.mrb[0].mxu0
  %v179 = vadd.f32 %v97, %v178
  %v180 = vpop.f32.mrb[0].mxu0
  %181 = vdwg.mxu0
  %v183 = vsel %vm104, %v39, 0
  %v186 = vsel %vm108, %v55, 0
  %188 = vmatprep.subr.mxu0 0.0
  %189 = vmatpush1.msra.mxu0 %v48
  %190 = vmatprep.subr.mxu0 0.0
  %191 = vmatpush1.msra.mxu0 %v49
  %192 = vmatprep.subr.mxu0 0.0
  %193 = vmatpush1.msra.mxu0 %v50
  %194 = vmatprep.subr.mxu0 0.0
  %195 = vmatpush1.msra.mxu0 %v51
  %196 = vmatprep.subr.mxu0 0.0
  %197 = vmatpush1.msra.mxu0 %v52
  %198 = vmatprep.subr.mxu0 0.0
  %199 = vmatpush1.msra.mxu0 %v53
  %200 = vmatprep.subr.mxu0 0.0
  %201 = vmatpush1.msra.mxu0 %v54
  %202 = vmatprep.subr.mxu0 0.0
  %203 = vmatpush1.msra.mxu0 %v186
  %204 = vmatprep.subr.mxu0 0.0
  %205 = vmatpush1.msra.mxu0 0.0
  %206 = vmatprep.subr.mxu0 0.0
  %207 = vmatpush1.msra.mxu0 0.0
  %208 = vmatprep.subr.mxu0 0.0
  %209 = vmatpush1.msra.mxu0 0.0
  %210 = vmatprep.subr.mxu0 0.0
  %211 = vmatpush1.msra.mxu0 0.0
  %212 = vmatprep.subr.mxu0 0.0
  %213 = vmatpush1.msra.mxu0 0.0
  %214 = vmatprep.subr.mxu0 0.0
  %215 = vmatpush1.msra.mxu0 0.0
  %216 = vmatprep.subr.mxu0 0.0
  %217 = vmatpush1.msra.mxu0 0.0
  %218 = vmatprep.subr.mxu0 0.0
  %219 = vmatpush1.msra.mxu0 0.0
  %220 = vmatprep.subr.mxu0 0.0
  %221 = vmatpush1.msra.mxu0 0.0
  %222 = vmatprep.subr.mxu0 0.0
  %223 = vmatpush1.msra.mxu0 0.0
  %224 = vmatprep.subr.mxu0 0.0
  %225 = vmatpush1.msra.mxu0 0.0
  %226 = vmatprep.subr.mxu0 0.0
  %227 = vmatpush1.msra.mxu0 0.0
  %228 = vmatprep.subr.mxu0 0.0
  %229 = vmatpush1.msra.mxu0 0.0
  %230 = vmatprep.subr.mxu0 0.0
  %231 = vmatpush1.msra.mxu0 0.0
  %232 = vmatprep.subr.mxu0 0.0
  %233 = vmatpush1.msra.mxu0 0.0
  %234 = vmatprep.subr.mxu0 0.0
  %235 = vmatpush1.msra.mxu0 0.0
  %236 = vmatprep.subr.mxu0 0.0
  %237 = vmatpush1.msra.mxu0 0.0
  %238 = vmatprep.subr.mxu0 0.0
  %239 = vmatpush1.msra.mxu0 0.0
  %240 = vmatprep.subr.mxu0 0.0
  %241 = vmatpush1.msra.mxu0 0.0
  %242 = vmatprep.subr.mxu0 0.0
  %243 = vmatpush1.msra.mxu0 0.0
  %244 = vmatprep.subr.mxu0 0.0
  %245 = vmatpush1.msra.mxu0 0.0
  %246 = vmatprep.subr.mxu0 0.0
  %247 = vmatpush1.msra.mxu0 0.0
  %248 = vmatprep.subr.mxu0 0.0
  %249 = vmatpush1.msra.mxu0 0.0
  %250 = vmatprep.subr.mxu0 0.0
  %251 = vmatpush1.msra.mxu0 0.0
  %252 = vmatprep.mubr.f32.mxu0 0.0
  %253 = vmatmul.mubr.f32.gmra.mrb[0].mxu0 %v183
  %v254 = vpop.f32.mrb[0].mxu0
  %v255 = vadd.f32 %v101, %v254
  %v256 = vpop.f32.mrb[0].mxu0
  %257 = vdwg.mxu0
  %v258 = vlaneseq
  %v259 = vand.u32 %v258, 127
  %vm260 = vcmp.ge.s32.totalorder %v259, 8
  %vm261 = vcmp.lt.s32.totalorder %v259, 12
  %vm262 = vmand %vm260, %vm261
  %v263 = vsel %vm262, 1.0, 0.5
  %v264 = vmul.f32 %v56, 0.0
  %v265 = vmul.f32 %v57, 0.0
  %v268 = vrot.slane %v264, 1
  %v269 = vrot.slane %v265, 1
  %v272 = vadd.f32 %v264, %v268
  %v273 = vadd.f32 %v265, %v269
  %v274 = vrot.slane %v264, 2
  %v275 = vrot.slane %v265, 2
  %v278 = vadd.f32 %v272, %v274
  %v279 = vadd.f32 %v273, %v275
  %v280 = vrot.slane %v264, 3
  %v281 = vrot.slane %v265, 3
  %v284 = vadd.f32 %v278, %v280
  %v285 = vadd.f32 %v279, %v281
  %v286 = vadd.f32 %v179, %v284
  %v287 = vadd.f32 %v255, %v285
  %v288 = vmul.f32 %v286, %v263
  %v289 = vmul.f32 %v287, %v263
  %v290 = vtanh.pop %v288
  %v291 = vtanh.pop %v289
  %v292 = vmul.f32 %v290, 0.5
  %v293 = vmul.f32 %v291, 0.5
  %v294 = vadd.f32 %v292, 0.5
  %v295 = vadd.f32 %v293, 0.5
  %v296 = vmul.f32 %v294, 0.0
  %v297 = vmul.f32 %v295, 0.0
  %300 = vrot.lane.b32.xlu0 %v290, 120
  %v301 = vpop.permute.xlu0 %300
  %302 = vrot.lane.b32.xlu0 %v291, 120
  %v303 = vpop.permute.xlu0 %302
  %v306 = vmul.f32 %v294, %v301
  %v307 = vmul.f32 %v295, %v303
  %310 = vrot.lane.b32.xlu0 %v306, 4
  %v311 = vpop.permute.xlu0 %310
  %312 = vrot.lane.b32.xlu0 %v307, 4
  %v313 = vpop.permute.xlu0 %312
  %v316 = vadd.f32 %v296, %v311
  %v317 = vadd.f32 %v297, %v313
  %v318 = vtanh.pop %v316
  %v319 = vtanh.pop %v317
  %322 = vrot.lane.b32.xlu0 %v318, 8
  %v323 = vpop.permute.xlu0 %322
  %324 = vrot.lane.b32.xlu0 %v319, 8
  %v325 = vpop.permute.xlu0 %324
  %v328 = vmul.f32 %v294, %v323
  %v329 = vmul.f32 %v295, %v325
  %331 = vset.pattern.permute.xlu0 12
  %332 = vperm.xlu0 %331, %v328
  %v333 = vpop.permute.xlu0 %332
  %336 = vset.pattern.permute.xlu0 12
  %337 = vperm.xlu0 %336, %v329
  %v338 = vpop.permute.xlu0 %337
  %v340 = vmul.f32 %v333, %v59
  %v341 = vmul.f32 %v338, %v60
  %342 = vset.pattern.permute.xlu0 13
  %343 = vperm.xlu0 %342, %v328
  %v344 = vpop.permute.xlu0 %343
  %346 = vset.pattern.permute.xlu0 13
  %347 = vperm.xlu0 %346, %v329
  %v348 = vpop.permute.xlu0 %347
  %v352 = vrot.slane %v59, 1
  %v353 = vrot.slane %v60, 1
  %v356 = vmul.f32 %v344, %v352
  %v357 = vmul.f32 %v348, %v353
  %v358 = vadd.f32 %v340, %v356
  %v359 = vadd.f32 %v341, %v357
  %360 = vset.pattern.permute.xlu0 14
  %361 = vperm.xlu0 %360, %v328
  %v362 = vpop.permute.xlu0 %361
  %364 = vset.pattern.permute.xlu0 14
  %365 = vperm.xlu0 %364, %v329
  %v366 = vpop.permute.xlu0 %365
  %v368 = vrot.slane %v59, 2
  %v369 = vrot.slane %v60, 2
  %v372 = vmul.f32 %v362, %v368
  %v373 = vmul.f32 %v366, %v369
  %v374 = vadd.f32 %v358, %v372
  %v375 = vadd.f32 %v359, %v373
  %376 = vset.pattern.permute.xlu0 15
  %377 = vperm.xlu0 %376, %v328
  %v378 = vpop.permute.xlu0 %377
  %380 = vset.pattern.permute.xlu0 15
  %381 = vperm.xlu0 %380, %v329
  %v382 = vpop.permute.xlu0 %381
  %v384 = vrot.slane %v59, 3
  %v385 = vrot.slane %v60, 3
  %v388 = vmul.f32 %v378, %v384
  %v389 = vmul.f32 %v382, %v385
  %v390 = vadd.f32 %v374, %v388
  %v391 = vadd.f32 %v375, %v389
  %v393 = vrot.slane %v63, 1
  %v396 = vadd.f32 %v390, %v63
  %v397 = vadd.f32 %v391, %v393
  %v398 = vmul.f32 %v61, 0.0
  %v399 = vmul.f32 %v62, 0.0
  %v402 = vrot.slane %v398, 1
  %v403 = vrot.slane %v399, 1
  %v406 = vadd.f32 %v398, %v402
  %v407 = vadd.f32 %v399, %v403
  %v408 = vrot.slane %v398, 2
  %v409 = vrot.slane %v399, 2
  %v412 = vadd.f32 %v406, %v408
  %v413 = vadd.f32 %v407, %v409
  %v414 = vrot.slane %v398, 3
  %v415 = vrot.slane %v399, 3
  %v418 = vadd.f32 %v412, %v414
  %v419 = vadd.f32 %v413, %v415
  %v420 = vadd.f32 %v396, %v418
  %v421 = vadd.f32 %v397, %v419
  %v422 = vmul.f32 %v420, %v263
  %v423 = vmul.f32 %v421, %v263
  %v424 = vtanh.pop %v422
  %v425 = vtanh.pop %v423
  %v426 = vmul.f32 %v424, 0.5
  %v427 = vmul.f32 %v425, 0.5
  %v428 = vadd.f32 %v426, 0.5
  %v429 = vadd.f32 %v427, 0.5
  %v430 = vmul.f32 %v428, 0.0
  %v431 = vmul.f32 %v429, 0.0
  %434 = vrot.lane.b32.xlu0 %v424, 120
  %v435 = vpop.permute.xlu0 %434
  %436 = vrot.lane.b32.xlu0 %v425, 120
  %v437 = vpop.permute.xlu0 %436
  %v440 = vmul.f32 %v428, %v435
  %v441 = vmul.f32 %v429, %v437
  %444 = vrot.lane.b32.xlu0 %v440, 4
  %v445 = vpop.permute.xlu0 %444
  %446 = vrot.lane.b32.xlu0 %v441, 4
  %v447 = vpop.permute.xlu0 %446
  %v450 = vadd.f32 %v430, %v445
  %v451 = vadd.f32 %v431, %v447
  %v452 = vtanh.pop %v450
  %v453 = vtanh.pop %v451
  %456 = vrot.lane.b32.xlu0 %v452, 8
  %v457 = vpop.permute.xlu0 %456
  %458 = vrot.lane.b32.xlu0 %v453, 8
  %v459 = vpop.permute.xlu0 %458
  %v462 = vmul.f32 %v428, %v457
  %v463 = vmul.f32 %v429, %v459
  %v464 = vmul.f32 %v333, %v56
  %v465 = vmul.f32 %v338, %v57
  %v468 = vrot.slane %v56, 1
  %v469 = vrot.slane %v57, 1
  %v472 = vmul.f32 %v344, %v468
  %v473 = vmul.f32 %v348, %v469
  %v474 = vadd.f32 %v464, %v472
  %v475 = vadd.f32 %v465, %v473
  %v476 = vrot.slane %v56, 2
  %v477 = vrot.slane %v57, 2
  %v480 = vmul.f32 %v362, %v476
  %v481 = vmul.f32 %v366, %v477
  %v482 = vadd.f32 %v474, %v480
  %v483 = vadd.f32 %v475, %v481
  %v484 = vrot.slane %v56, 3
  %v485 = vrot.slane %v57, 3
  %v488 = vmul.f32 %v378, %v484
  %v489 = vmul.f32 %v382, %v485
  %v490 = vadd.f32 %v482, %v488
  %v491 = vadd.f32 %v483, %v489
  %v494 = vrot.slane %v490, 7
  %v495 = vrot.slane %v491, 7
  %v498 = vadd.f32 %v179, %v494
  %v499 = vadd.f32 %v255, %v495
  %v500 = vmul.f32 %v498, %v263
  %v501 = vmul.f32 %v499, %v263
  %v502 = vtanh.pop %v500
  %v503 = vtanh.pop %v501
  %v504 = vmul.f32 %v502, 0.5
  %v505 = vmul.f32 %v503, 0.5
  %v506 = vadd.f32 %v504, 0.5
  %v507 = vadd.f32 %v505, 0.5
  %v510 = vrot.slane %v316, 7
  %v511 = vrot.slane %v317, 7
  %v514 = vmul.f32 %v506, %v510
  %v515 = vmul.f32 %v507, %v511
  %518 = vrot.lane.b32.xlu0 %v502, 120
  %v519 = vpop.permute.xlu0 %518
  %520 = vrot.lane.b32.xlu0 %v503, 120
  %v521 = vpop.permute.xlu0 %520
  %v524 = vmul.f32 %v506, %v519
  %v525 = vmul.f32 %v507, %v521
  %528 = vrot.lane.b32.xlu0 %v524, 4
  %v529 = vpop.permute.xlu0 %528
  %530 = vrot.lane.b32.xlu0 %v525, 4
  %v531 = vpop.permute.xlu0 %530
  %v534 = vadd.f32 %v514, %v529
  %v535 = vadd.f32 %v515, %v531
  %v536 = vtanh.pop %v534
  %v537 = vtanh.pop %v535
  %540 = vrot.lane.b32.xlu0 %v536, 8
  %v541 = vpop.permute.xlu0 %540
  %542 = vrot.lane.b32.xlu0 %v537, 8
  %v543 = vpop.permute.xlu0 %542
  %v546 = vmul.f32 %v506, %v541
  %v547 = vmul.f32 %v507, %v543
  %549 = vset.pattern.permute.xlu0 12
  %550 = vperm.xlu0 %549, %v546
  %v551 = vpop.permute.xlu0 %550
  %554 = vset.pattern.permute.xlu0 12
  %555 = vperm.xlu0 %554, %v547
  %v556 = vpop.permute.xlu0 %555
  %v558 = vrot.slane %v59, 7
  %v559 = vrot.slane %v60, 7
  %v562 = vmul.f32 %v551, %v558
  %v563 = vmul.f32 %v556, %v559
  %564 = vset.pattern.permute.xlu0 13
  %565 = vperm.xlu0 %564, %v546
  %v566 = vpop.permute.xlu0 %565
  %568 = vset.pattern.permute.xlu0 13
  %569 = vperm.xlu0 %568, %v547
  %v570 = vpop.permute.xlu0 %569
  %v572 = vmul.f32 %v566, %v59
  %v573 = vmul.f32 %v570, %v60
  %v574 = vadd.f32 %v562, %v572
  %v575 = vadd.f32 %v563, %v573
  %576 = vset.pattern.permute.xlu0 14
  %577 = vperm.xlu0 %576, %v546
  %v578 = vpop.permute.xlu0 %577
  %580 = vset.pattern.permute.xlu0 14
  %581 = vperm.xlu0 %580, %v547
  %v582 = vpop.permute.xlu0 %581
  %v584 = vmul.f32 %v578, %v352
  %v585 = vmul.f32 %v582, %v353
  %v586 = vadd.f32 %v574, %v584
  %v587 = vadd.f32 %v575, %v585
  %588 = vset.pattern.permute.xlu0 15
  %589 = vperm.xlu0 %588, %v546
  %v590 = vpop.permute.xlu0 %589
  %592 = vset.pattern.permute.xlu0 15
  %593 = vperm.xlu0 %592, %v547
  %v594 = vpop.permute.xlu0 %593
  %v596 = vmul.f32 %v590, %v368
  %v597 = vmul.f32 %v594, %v369
  %v598 = vadd.f32 %v586, %v596
  %v599 = vadd.f32 %v587, %v597
  %v600 = vrot.slane %v63, 7
  %v602 = vadd.f32 %v598, %v600
  %v603 = vadd.f32 %v599, %v63
  %605 = vset.pattern.permute.xlu0 12
  %606 = vperm.xlu0 %605, %v462
  %v607 = vpop.permute.xlu0 %606
  %610 = vset.pattern.permute.xlu0 12
  %611 = vperm.xlu0 %610, %v463
  %v612 = vpop.permute.xlu0 %611
  %v614 = vmul.f32 %v607, %v61
  %v615 = vmul.f32 %v612, %v62
  %616 = vset.pattern.permute.xlu0 13
  %617 = vperm.xlu0 %616, %v462
  %v618 = vpop.permute.xlu0 %617
  %620 = vset.pattern.permute.xlu0 13
  %621 = vperm.xlu0 %620, %v463
  %v622 = vpop.permute.xlu0 %621
  %v626 = vrot.slane %v61, 1
  %v627 = vrot.slane %v62, 1
  %v630 = vmul.f32 %v618, %v626
  %v631 = vmul.f32 %v622, %v627
  %v632 = vadd.f32 %v614, %v630
  %v633 = vadd.f32 %v615, %v631
  %634 = vset.pattern.permute.xlu0 14
  %635 = vperm.xlu0 %634, %v462
  %v636 = vpop.permute.xlu0 %635
  %638 = vset.pattern.permute.xlu0 14
  %639 = vperm.xlu0 %638, %v463
  %v640 = vpop.permute.xlu0 %639
  %v642 = vrot.slane %v61, 2
  %v643 = vrot.slane %v62, 2
  %v646 = vmul.f32 %v636, %v642
  %v647 = vmul.f32 %v640, %v643
  %v648 = vadd.f32 %v632, %v646
  %v649 = vadd.f32 %v633, %v647
  %650 = vset.pattern.permute.xlu0 15
  %651 = vperm.xlu0 %650, %v462
  %v652 = vpop.permute.xlu0 %651
  %654 = vset.pattern.permute.xlu0 15
  %655 = vperm.xlu0 %654, %v463
  %v656 = vpop.permute.xlu0 %655
  %v658 = vrot.slane %v61, 3
  %v659 = vrot.slane %v62, 3
  %v662 = vmul.f32 %v652, %v658
  %v663 = vmul.f32 %v656, %v659
  %v664 = vadd.f32 %v648, %v662
  %v665 = vadd.f32 %v649, %v663
  %v668 = vrot.slane %v664, 7
  %v669 = vrot.slane %v665, 7
  %v672 = vadd.f32 %v602, %v668
  %v673 = vadd.f32 %v603, %v669
  %v674 = vmul.f32 %v672, %v263
  %v675 = vmul.f32 %v673, %v263
  %v676 = vtanh.pop %v674
  %v677 = vtanh.pop %v675
  %v678 = vmul.f32 %v676, 0.5
  %v679 = vmul.f32 %v677, 0.5
  %v680 = vadd.f32 %v678, 0.5
  %v681 = vadd.f32 %v679, 0.5
  %v684 = vrot.slane %v450, 7
  %v685 = vrot.slane %v451, 7
  %v688 = vmul.f32 %v680, %v684
  %v689 = vmul.f32 %v681, %v685
  %692 = vrot.lane.b32.xlu0 %v676, 120
  %v693 = vpop.permute.xlu0 %692
  %694 = vrot.lane.b32.xlu0 %v677, 120
  %v695 = vpop.permute.xlu0 %694
  %v698 = vmul.f32 %v680, %v693
  %v699 = vmul.f32 %v681, %v695
  %702 = vrot.lane.b32.xlu0 %v698, 4
  %v703 = vpop.permute.xlu0 %702
  %704 = vrot.lane.b32.xlu0 %v699, 4
  %v705 = vpop.permute.xlu0 %704
  %v708 = vadd.f32 %v688, %v703
  %v709 = vadd.f32 %v689, %v705
  %v710 = vtanh.pop %v708
  %v711 = vtanh.pop %v709
  %714 = vrot.lane.b32.xlu0 %v710, 8
  %v715 = vpop.permute.xlu0 %714
  %716 = vrot.lane.b32.xlu0 %v711, 8
  %v717 = vpop.permute.xlu0 %716
  %v720 = vmul.f32 %v680, %v715
  %v721 = vmul.f32 %v681, %v717
  %v722 = vrot.slane %v56, 7
  %v723 = vrot.slane %v57, 7
  %v726 = vmul.f32 %v551, %v722
  %v727 = vmul.f32 %v556, %v723
  %v728 = vmul.f32 %v566, %v56
  %v729 = vmul.f32 %v570, %v57
  %v730 = vadd.f32 %v726, %v728
  %v731 = vadd.f32 %v727, %v729
  %v732 = vmul.f32 %v578, %v468
  %v733 = vmul.f32 %v582, %v469
  %v734 = vadd.f32 %v730, %v732
  %v735 = vadd.f32 %v731, %v733
  %v736 = vmul.f32 %v590, %v476
  %v737 = vmul.f32 %v594, %v477
  %v738 = vadd.f32 %v734, %v736
  %v739 = vadd.f32 %v735, %v737
  %v742 = vrot.slane %v738, 7
  %v743 = vrot.slane %v739, 7
  %v746 = vadd.f32 %v179, %v742
  %v747 = vadd.f32 %v255, %v743
  %v748 = vmul.f32 %v746, %v263
  %v749 = vmul.f32 %v747, %v263
  %v750 = vtanh.pop %v748
  %v751 = vtanh.pop %v749
  %v752 = vmul.f32 %v750, 0.5
  %v753 = vmul.f32 %v751, 0.5
  %v754 = vadd.f32 %v752, 0.5
  %v755 = vadd.f32 %v753, 0.5
  %v758 = vrot.slane %v534, 7
  %v759 = vrot.slane %v535, 7
  %v762 = vmul.f32 %v754, %v758
  %v763 = vmul.f32 %v755, %v759
  %766 = vrot.lane.b32.xlu0 %v750, 120
  %v767 = vpop.permute.xlu0 %766
  %768 = vrot.lane.b32.xlu0 %v751, 120
  %v769 = vpop.permute.xlu0 %768
  %v772 = vmul.f32 %v754, %v767
  %v773 = vmul.f32 %v755, %v769
  %776 = vrot.lane.b32.xlu0 %v772, 4
  %v777 = vpop.permute.xlu0 %776
  %778 = vrot.lane.b32.xlu0 %v773, 4
  %v779 = vpop.permute.xlu0 %778
  %v782 = vadd.f32 %v762, %v777
  %v783 = vadd.f32 %v763, %v779
  %v784 = vtanh.pop %v782
  %v785 = vtanh.pop %v783
  %788 = vrot.lane.b32.xlu0 %v784, 8
  %v789 = vpop.permute.xlu0 %788
  %790 = vrot.lane.b32.xlu0 %v785, 8
  %v791 = vpop.permute.xlu0 %790
  %v794 = vmul.f32 %v754, %v789
  %v795 = vmul.f32 %v755, %v791
  %797 = vset.pattern.permute.xlu0 12
  %798 = vperm.xlu0 %797, %v794
  %v799 = vpop.permute.xlu0 %798
  %802 = vset.pattern.permute.xlu0 12
  %803 = vperm.xlu0 %802, %v795
  %v804 = vpop.permute.xlu0 %803
  %v806 = vrot.slane %v59, 6
  %v807 = vrot.slane %v60, 6
  %v810 = vmul.f32 %v799, %v806
  %v811 = vmul.f32 %v804, %v807
  %812 = vset.pattern.permute.xlu0 13
  %813 = vperm.xlu0 %812, %v794
  %v814 = vpop.permute.xlu0 %813
  %816 = vset.pattern.permute.xlu0 13
  %817 = vperm.xlu0 %816, %v795
  %v818 = vpop.permute.xlu0 %817
  %v820 = vmul.f32 %v814, %v558
  %v821 = vmul.f32 %v818, %v559
  %v822 = vadd.f32 %v810, %v820
  %v823 = vadd.f32 %v811, %v821
  %824 = vset.pattern.permute.xlu0 14
  %825 = vperm.xlu0 %824, %v794
  %v826 = vpop.permute.xlu0 %825
  %828 = vset.pattern.permute.xlu0 14
  %829 = vperm.xlu0 %828, %v795
  %v830 = vpop.permute.xlu0 %829
  %v832 = vmul.f32 %v826, %v59
  %v833 = vmul.f32 %v830, %v60
  %v834 = vadd.f32 %v822, %v832
  %v835 = vadd.f32 %v823, %v833
  %836 = vset.pattern.permute.xlu0 15
  %837 = vperm.xlu0 %836, %v794
  %v838 = vpop.permute.xlu0 %837
  %840 = vset.pattern.permute.xlu0 15
  %841 = vperm.xlu0 %840, %v795
  %v842 = vpop.permute.xlu0 %841
  %v844 = vmul.f32 %v838, %v352
  %v845 = vmul.f32 %v842, %v353
  %v846 = vadd.f32 %v834, %v844
  %v847 = vadd.f32 %v835, %v845
  %v848 = vrot.slane %v63, 6
  %v850 = vadd.f32 %v846, %v848
  %v851 = vadd.f32 %v847, %v600
  %853 = vset.pattern.permute.xlu0 12
  %854 = vperm.xlu0 %853, %v720
  %v855 = vpop.permute.xlu0 %854
  %858 = vset.pattern.permute.xlu0 12
  %859 = vperm.xlu0 %858, %v721
  %v860 = vpop.permute.xlu0 %859
  %v862 = vrot.slane %v61, 7
  %v863 = vrot.slane %v62, 7
  %v866 = vmul.f32 %v855, %v862
  %v867 = vmul.f32 %v860, %v863
  %868 = vset.pattern.permute.xlu0 13
  %869 = vperm.xlu0 %868, %v720
  %v870 = vpop.permute.xlu0 %869
  %872 = vset.pattern.permute.xlu0 13
  %873 = vperm.xlu0 %872, %v721
  %v874 = vpop.permute.xlu0 %873
  %v876 = vmul.f32 %v870, %v61
  %v877 = vmul.f32 %v874, %v62
  %v878 = vadd.f32 %v866, %v876
  %v879 = vadd.f32 %v867, %v877
  %880 = vset.pattern.permute.xlu0 14
  %881 = vperm.xlu0 %880, %v720
  %v882 = vpop.permute.xlu0 %881
  %884 = vset.pattern.permute.xlu0 14
  %885 = vperm.xlu0 %884, %v721
  %v886 = vpop.permute.xlu0 %885
  %v888 = vmul.f32 %v882, %v626
  %v889 = vmul.f32 %v886, %v627
  %v890 = vadd.f32 %v878, %v888
  %v891 = vadd.f32 %v879, %v889
  %892 = vset.pattern.permute.xlu0 15
  %893 = vperm.xlu0 %892, %v720
  %v894 = vpop.permute.xlu0 %893
  %896 = vset.pattern.permute.xlu0 15
  %897 = vperm.xlu0 %896, %v721
  %v898 = vpop.permute.xlu0 %897
  %v900 = vmul.f32 %v894, %v642
  %v901 = vmul.f32 %v898, %v643
  %v902 = vadd.f32 %v890, %v900
  %v903 = vadd.f32 %v891, %v901
  %v906 = vrot.slane %v902, 7
  %v907 = vrot.slane %v903, 7
  %v910 = vadd.f32 %v850, %v906
  %v911 = vadd.f32 %v851, %v907
  %v912 = vmul.f32 %v910, %v263
  %v913 = vmul.f32 %v911, %v263
  %v914 = vtanh.pop %v912
  %v915 = vtanh.pop %v913
  %v916 = vmul.f32 %v914, 0.5
  %v917 = vmul.f32 %v915, 0.5
  %v918 = vadd.f32 %v916, 0.5
  %v919 = vadd.f32 %v917, 0.5
  %v922 = vrot.slane %v708, 7
  %v923 = vrot.slane %v709, 7
  %v926 = vmul.f32 %v918, %v922
  %v927 = vmul.f32 %v919, %v923
  %930 = vrot.lane.b32.xlu0 %v914, 120
  %v931 = vpop.permute.xlu0 %930
  %932 = vrot.lane.b32.xlu0 %v915, 120
  %v933 = vpop.permute.xlu0 %932
  %v936 = vmul.f32 %v918, %v931
  %v937 = vmul.f32 %v919, %v933
  %940 = vrot.lane.b32.xlu0 %v936, 4
  %v941 = vpop.permute.xlu0 %940
  %942 = vrot.lane.b32.xlu0 %v937, 4
  %v943 = vpop.permute.xlu0 %942
  %v946 = vadd.f32 %v926, %v941
  %v947 = vadd.f32 %v927, %v943
  %v948 = vtanh.pop %v946
  %v949 = vtanh.pop %v947
  %952 = vrot.lane.b32.xlu0 %v948, 8
  %v953 = vpop.permute.xlu0 %952
  %954 = vrot.lane.b32.xlu0 %v949, 8
  %v955 = vpop.permute.xlu0 %954
  %v958 = vmul.f32 %v918, %v953
  %v959 = vmul.f32 %v919, %v955
  %v960 = vrot.slane %v56, 6
  %v961 = vrot.slane %v57, 6
  %v964 = vmul.f32 %v799, %v960
  %v965 = vmul.f32 %v804, %v961
  %v966 = vmul.f32 %v814, %v722
  %v967 = vmul.f32 %v818, %v723
  %v968 = vadd.f32 %v964, %v966
  %v969 = vadd.f32 %v965, %v967
  %v970 = vmul.f32 %v826, %v56
  %v971 = vmul.f32 %v830, %v57
  %v972 = vadd.f32 %v968, %v970
  %v973 = vadd.f32 %v969, %v971
  %v974 = vmul.f32 %v838, %v468
  %v975 = vmul.f32 %v842, %v469
  %v976 = vadd.f32 %v972, %v974
  %v977 = vadd.f32 %v973, %v975
  %v980 = vrot.slane %v976, 7
  %v981 = vrot.slane %v977, 7
  %v984 = vadd.f32 %v179, %v980
  %v985 = vadd.f32 %v255, %v981
  %v986 = vmul.f32 %v984, %v263
  %v987 = vmul.f32 %v985, %v263
  %v988 = vtanh.pop %v986
  %v989 = vtanh.pop %v987
  %v990 = vmul.f32 %v988, 0.5
  %v991 = vmul.f32 %v989, 0.5
  %v992 = vadd.f32 %v990, 0.5
  %v993 = vadd.f32 %v991, 0.5
  %v996 = vrot.slane %v782, 7
  %v997 = vrot.slane %v783, 7
  %v1000 = vmul.f32 %v992, %v996
  %v1001 = vmul.f32 %v993, %v997
  %1004 = vrot.lane.b32.xlu0 %v988, 120
  %v1005 = vpop.permute.xlu0 %1004
  %1006 = vrot.lane.b32.xlu0 %v989, 120
  %v1007 = vpop.permute.xlu0 %1006
  %v1010 = vmul.f32 %v992, %v1005
  %v1011 = vmul.f32 %v993, %v1007
  %1014 = vrot.lane.b32.xlu0 %v1010, 4
  %v1015 = vpop.permute.xlu0 %1014
  %1016 = vrot.lane.b32.xlu0 %v1011, 4
  %v1017 = vpop.permute.xlu0 %1016
  %v1020 = vadd.f32 %v1000, %v1015
  %v1021 = vadd.f32 %v1001, %v1017
  %v1022 = vtanh.pop %v1020
  %v1023 = vtanh.pop %v1021
  %1026 = vrot.lane.b32.xlu0 %v1022, 8
  %v1027 = vpop.permute.xlu0 %1026
  %1028 = vrot.lane.b32.xlu0 %v1023, 8
  %v1029 = vpop.permute.xlu0 %1028
  %v1032 = vmul.f32 %v992, %v1027
  %v1033 = vmul.f32 %v993, %v1029
  %1035 = vset.pattern.permute.xlu0 12
  %1036 = vperm.xlu0 %1035, %v1032
  %v1037 = vpop.permute.xlu0 %1036
  %1040 = vset.pattern.permute.xlu0 12
  %1041 = vperm.xlu0 %1040, %v1033
  %v1042 = vpop.permute.xlu0 %1041
  %v1044 = vrot.slane %v59, 5
  %v1045 = vrot.slane %v60, 5
  %v1048 = vmul.f32 %v1037, %v1044
  %v1049 = vmul.f32 %v1042, %v1045
  %1050 = vset.pattern.permute.xlu0 13
  %1051 = vperm.xlu0 %1050, %v1032
  %v1052 = vpop.permute.xlu0 %1051
  %1054 = vset.pattern.permute.xlu0 13
  %1055 = vperm.xlu0 %1054, %v1033
  %v1056 = vpop.permute.xlu0 %1055
  %v1058 = vmul.f32 %v1052, %v806
  %v1059 = vmul.f32 %v1056, %v807
  %v1060 = vadd.f32 %v1048, %v1058
  %v1061 = vadd.f32 %v1049, %v1059
  %1062 = vset.pattern.permute.xlu0 14
  %1063 = vperm.xlu0 %1062, %v1032
  %v1064 = vpop.permute.xlu0 %1063
  %1066 = vset.pattern.permute.xlu0 14
  %1067 = vperm.xlu0 %1066, %v1033
  %v1068 = vpop.permute.xlu0 %1067
  %v1070 = vmul.f32 %v1064, %v558
  %v1071 = vmul.f32 %v1068, %v559
  %v1072 = vadd.f32 %v1060, %v1070
  %v1073 = vadd.f32 %v1061, %v1071
  %1074 = vset.pattern.permute.xlu0 15
  %1075 = vperm.xlu0 %1074, %v1032
  %v1076 = vpop.permute.xlu0 %1075
  %1078 = vset.pattern.permute.xlu0 15
  %1079 = vperm.xlu0 %1078, %v1033
  %v1080 = vpop.permute.xlu0 %1079
  %v1082 = vmul.f32 %v1076, %v59
  %v1083 = vmul.f32 %v1080, %v60
  %v1084 = vadd.f32 %v1072, %v1082
  %v1085 = vadd.f32 %v1073, %v1083
  %v1086 = vrot.slane %v63, 5
  %v1088 = vadd.f32 %v1084, %v1086
  %v1089 = vadd.f32 %v1085, %v848
  %1091 = vset.pattern.permute.xlu0 12
  %1092 = vperm.xlu0 %1091, %v958
  %v1093 = vpop.permute.xlu0 %1092
  %1096 = vset.pattern.permute.xlu0 12
  %1097 = vperm.xlu0 %1096, %v959
  %v1098 = vpop.permute.xlu0 %1097
  %v1100 = vrot.slane %v61, 6
  %v1101 = vrot.slane %v62, 6
  %v1104 = vmul.f32 %v1093, %v1100
  %v1105 = vmul.f32 %v1098, %v1101
  %1106 = vset.pattern.permute.xlu0 13
  %1107 = vperm.xlu0 %1106, %v958
  %v1108 = vpop.permute.xlu0 %1107
  %1110 = vset.pattern.permute.xlu0 13
  %1111 = vperm.xlu0 %1110, %v959
  %v1112 = vpop.permute.xlu0 %1111
  %v1114 = vmul.f32 %v1108, %v862
  %v1115 = vmul.f32 %v1112, %v863
  %v1116 = vadd.f32 %v1104, %v1114
  %v1117 = vadd.f32 %v1105, %v1115
  %1118 = vset.pattern.permute.xlu0 14
  %1119 = vperm.xlu0 %1118, %v958
  %v1120 = vpop.permute.xlu0 %1119
  %1122 = vset.pattern.permute.xlu0 14
  %1123 = vperm.xlu0 %1122, %v959
  %v1124 = vpop.permute.xlu0 %1123
  %v1126 = vmul.f32 %v1120, %v61
  %v1127 = vmul.f32 %v1124, %v62
  %v1128 = vadd.f32 %v1116, %v1126
  %v1129 = vadd.f32 %v1117, %v1127
  %1130 = vset.pattern.permute.xlu0 15
  %1131 = vperm.xlu0 %1130, %v958
  %v1132 = vpop.permute.xlu0 %1131
  %1134 = vset.pattern.permute.xlu0 15
  %1135 = vperm.xlu0 %1134, %v959
  %v1136 = vpop.permute.xlu0 %1135
  %v1138 = vmul.f32 %v1132, %v626
  %v1139 = vmul.f32 %v1136, %v627
  %v1140 = vadd.f32 %v1128, %v1138
  %v1141 = vadd.f32 %v1129, %v1139
  %v1144 = vrot.slane %v1140, 7
  %v1145 = vrot.slane %v1141, 7
  %v1148 = vadd.f32 %v1088, %v1144
  %v1149 = vadd.f32 %v1089, %v1145
  %v1150 = vmul.f32 %v1148, %v263
  %v1151 = vmul.f32 %v1149, %v263
  %v1152 = vtanh.pop %v1150
  %v1153 = vtanh.pop %v1151
  %v1154 = vmul.f32 %v1152, 0.5
  %v1155 = vmul.f32 %v1153, 0.5
  %v1156 = vadd.f32 %v1154, 0.5
  %v1157 = vadd.f32 %v1155, 0.5
  %v1160 = vrot.slane %v946, 7
  %v1161 = vrot.slane %v947, 7
  %v1164 = vmul.f32 %v1156, %v1160
  %v1165 = vmul.f32 %v1157, %v1161
  %1168 = vrot.lane.b32.xlu0 %v1152, 120
  %v1169 = vpop.permute.xlu0 %1168
  %1170 = vrot.lane.b32.xlu0 %v1153, 120
  %v1171 = vpop.permute.xlu0 %1170
  %v1174 = vmul.f32 %v1156, %v1169
  %v1175 = vmul.f32 %v1157, %v1171
  %1178 = vrot.lane.b32.xlu0 %v1174, 4
  %v1179 = vpop.permute.xlu0 %1178
  %1180 = vrot.lane.b32.xlu0 %v1175, 4
  %v1181 = vpop.permute.xlu0 %1180
  %v1184 = vadd.f32 %v1164, %v1179
  %v1185 = vadd.f32 %v1165, %v1181
  %v1186 = vtanh.pop %v1184
  %v1187 = vtanh.pop %v1185
  %1190 = vrot.lane.b32.xlu0 %v1186, 8
  %v1191 = vpop.permute.xlu0 %1190
  %1192 = vrot.lane.b32.xlu0 %v1187, 8
  %v1193 = vpop.permute.xlu0 %1192
  %v1196 = vmul.f32 %v1156, %v1191
  %v1197 = vmul.f32 %v1157, %v1193
  %v1198 = vrot.slane %v56, 5
  %v1199 = vrot.slane %v57, 5
  %v1202 = vmul.f32 %v1037, %v1198
  %v1203 = vmul.f32 %v1042, %v1199
  %v1204 = vmul.f32 %v1052, %v960
  %v1205 = vmul.f32 %v1056, %v961
  %v1206 = vadd.f32 %v1202, %v1204
  %v1207 = vadd.f32 %v1203, %v1205
  %v1208 = vmul.f32 %v1064, %v722
  %v1209 = vmul.f32 %v1068, %v723
  %v1210 = vadd.f32 %v1206, %v1208
  %v1211 = vadd.f32 %v1207, %v1209
  %v1212 = vmul.f32 %v1076, %v56
  %v1213 = vmul.f32 %v1080, %v57
  %v1214 = vadd.f32 %v1210, %v1212
  %v1215 = vadd.f32 %v1211, %v1213
  %v1218 = vrot.slane %v1214, 7
  %v1219 = vrot.slane %v1215, 7
  %v1222 = vadd.f32 %v179, %v1218
  %v1223 = vadd.f32 %v255, %v1219
  %v1224 = vmul.f32 %v1222, %v263
  %v1225 = vmul.f32 %v1223, %v263
  %v1226 = vtanh.pop %v1224
  %v1227 = vtanh.pop %v1225
  %v1228 = vmul.f32 %v1226, 0.5
  %v1229 = vmul.f32 %v1227, 0.5
  %v1230 = vadd.f32 %v1228, 0.5
  %v1231 = vadd.f32 %v1229, 0.5
  %v1234 = vrot.slane %v1020, 7
  %v1235 = vrot.slane %v1021, 7
  %v1238 = vmul.f32 %v1230, %v1234
  %v1239 = vmul.f32 %v1231, %v1235
  %1242 = vrot.lane.b32.xlu0 %v1226, 120
  %v1243 = vpop.permute.xlu0 %1242
  %1244 = vrot.lane.b32.xlu0 %v1227, 120
  %v1245 = vpop.permute.xlu0 %1244
  %v1248 = vmul.f32 %v1230, %v1243
  %v1249 = vmul.f32 %v1231, %v1245
  %1252 = vrot.lane.b32.xlu0 %v1248, 4
  %v1253 = vpop.permute.xlu0 %1252
  %1254 = vrot.lane.b32.xlu0 %v1249, 4
  %v1255 = vpop.permute.xlu0 %1254
  %v1258 = vadd.f32 %v1238, %v1253
  %v1259 = vadd.f32 %v1239, %v1255
  %v1260 = vtanh.pop %v1258
  %v1261 = vtanh.pop %v1259
  %1264 = vrot.lane.b32.xlu0 %v1260, 8
  %v1265 = vpop.permute.xlu0 %1264
  %1266 = vrot.lane.b32.xlu0 %v1261, 8
  %v1267 = vpop.permute.xlu0 %1266
  %v1270 = vmul.f32 %v1230, %v1265
  %v1271 = vmul.f32 %v1231, %v1267
  %1273 = vset.pattern.permute.xlu0 12
  %1274 = vperm.xlu0 %1273, %v1270
  %v1275 = vpop.permute.xlu0 %1274
  %1278 = vset.pattern.permute.xlu0 12
  %1279 = vperm.xlu0 %1278, %v1271
  %v1280 = vpop.permute.xlu0 %1279
  %v1282 = vrot.slane %v59, 4
  %v1283 = vrot.slane %v60, 4
  %v1286 = vmul.f32 %v1275, %v1282
  %v1287 = vmul.f32 %v1280, %v1283
  %1288 = vset.pattern.permute.xlu0 13
  %1289 = vperm.xlu0 %1288, %v1270
  %v1290 = vpop.permute.xlu0 %1289
  %1292 = vset.pattern.permute.xlu0 13
  %1293 = vperm.xlu0 %1292, %v1271
  %v1294 = vpop.permute.xlu0 %1293
  %v1296 = vmul.f32 %v1290, %v1044
  %v1297 = vmul.f32 %v1294, %v1045
  %v1298 = vadd.f32 %v1286, %v1296
  %v1299 = vadd.f32 %v1287, %v1297
  %1300 = vset.pattern.permute.xlu0 14
  %1301 = vperm.xlu0 %1300, %v1270
  %v1302 = vpop.permute.xlu0 %1301
  %1304 = vset.pattern.permute.xlu0 14
  %1305 = vperm.xlu0 %1304, %v1271
  %v1306 = vpop.permute.xlu0 %1305
  %v1308 = vmul.f32 %v1302, %v806
  %v1309 = vmul.f32 %v1306, %v807
  %v1310 = vadd.f32 %v1298, %v1308
  %v1311 = vadd.f32 %v1299, %v1309
  %1312 = vset.pattern.permute.xlu0 15
  %1313 = vperm.xlu0 %1312, %v1270
  %v1314 = vpop.permute.xlu0 %1313
  %1316 = vset.pattern.permute.xlu0 15
  %1317 = vperm.xlu0 %1316, %v1271
  %v1318 = vpop.permute.xlu0 %1317
  %v1320 = vmul.f32 %v1314, %v558
  %v1321 = vmul.f32 %v1318, %v559
  %v1322 = vadd.f32 %v1310, %v1320
  %v1323 = vadd.f32 %v1311, %v1321
  %v1324 = vrot.slane %v63, 4
  %v1326 = vadd.f32 %v1322, %v1324
  %v1327 = vadd.f32 %v1323, %v1086
  %1329 = vset.pattern.permute.xlu0 12
  %1330 = vperm.xlu0 %1329, %v1196
  %v1331 = vpop.permute.xlu0 %1330
  %1334 = vset.pattern.permute.xlu0 12
  %1335 = vperm.xlu0 %1334, %v1197
  %v1336 = vpop.permute.xlu0 %1335
  %v1338 = vrot.slane %v61, 5
  %v1339 = vrot.slane %v62, 5
  %v1342 = vmul.f32 %v1331, %v1338
  %v1343 = vmul.f32 %v1336, %v1339
  %1344 = vset.pattern.permute.xlu0 13
  %1345 = vperm.xlu0 %1344, %v1196
  %v1346 = vpop.permute.xlu0 %1345
  %1348 = vset.pattern.permute.xlu0 13
  %1349 = vperm.xlu0 %1348, %v1197
  %v1350 = vpop.permute.xlu0 %1349
  %v1352 = vmul.f32 %v1346, %v1100
  %v1353 = vmul.f32 %v1350, %v1101
  %v1354 = vadd.f32 %v1342, %v1352
  %v1355 = vadd.f32 %v1343, %v1353
  %1356 = vset.pattern.permute.xlu0 14
  %1357 = vperm.xlu0 %1356, %v1196
  %v1358 = vpop.permute.xlu0 %1357
  %1360 = vset.pattern.permute.xlu0 14
  %1361 = vperm.xlu0 %1360, %v1197
  %v1362 = vpop.permute.xlu0 %1361
  %v1364 = vmul.f32 %v1358, %v862
  %v1365 = vmul.f32 %v1362, %v863
  %v1366 = vadd.f32 %v1354, %v1364
  %v1367 = vadd.f32 %v1355, %v1365
  %1368 = vset.pattern.permute.xlu0 15
  %1369 = vperm.xlu0 %1368, %v1196
  %v1370 = vpop.permute.xlu0 %1369
  %1372 = vset.pattern.permute.xlu0 15
  %1373 = vperm.xlu0 %1372, %v1197
  %v1374 = vpop.permute.xlu0 %1373
  %v1376 = vmul.f32 %v1370, %v61
  %v1377 = vmul.f32 %v1374, %v62
  %v1378 = vadd.f32 %v1366, %v1376
  %v1379 = vadd.f32 %v1367, %v1377
  %v1382 = vrot.slane %v1378, 7
  %v1383 = vrot.slane %v1379, 7
  %v1386 = vadd.f32 %v1326, %v1382
  %v1387 = vadd.f32 %v1327, %v1383
  %v1388 = vmul.f32 %v1386, %v263
  %v1389 = vmul.f32 %v1387, %v263
  %v1390 = vtanh.pop %v1388
  %v1391 = vtanh.pop %v1389
  %v1392 = vmul.f32 %v1390, 0.5
  %v1393 = vmul.f32 %v1391, 0.5
  %v1394 = vadd.f32 %v1392, 0.5
  %v1395 = vadd.f32 %v1393, 0.5
  %v1398 = vrot.slane %v1184, 7
  %v1399 = vrot.slane %v1185, 7
  %v1402 = vmul.f32 %v1394, %v1398
  %v1403 = vmul.f32 %v1395, %v1399
  %1406 = vrot.lane.b32.xlu0 %v1390, 120
  %v1407 = vpop.permute.xlu0 %1406
  %1408 = vrot.lane.b32.xlu0 %v1391, 120
  %v1409 = vpop.permute.xlu0 %1408
  %v1412 = vmul.f32 %v1394, %v1407
  %v1413 = vmul.f32 %v1395, %v1409
  %1416 = vrot.lane.b32.xlu0 %v1412, 4
  %v1417 = vpop.permute.xlu0 %1416
  %1418 = vrot.lane.b32.xlu0 %v1413, 4
  %v1419 = vpop.permute.xlu0 %1418
  %v1422 = vadd.f32 %v1402, %v1417
  %v1423 = vadd.f32 %v1403, %v1419
  %v1424 = vtanh.pop %v1422
  %v1425 = vtanh.pop %v1423
  %1428 = vrot.lane.b32.xlu0 %v1424, 8
  %v1429 = vpop.permute.xlu0 %1428
  %1430 = vrot.lane.b32.xlu0 %v1425, 8
  %v1431 = vpop.permute.xlu0 %1430
  %v1434 = vmul.f32 %v1394, %v1429
  %v1435 = vmul.f32 %v1395, %v1431
  %v1436 = vrot.slane %v56, 4
  %v1437 = vrot.slane %v57, 4
  %v1440 = vmul.f32 %v1275, %v1436
  %v1441 = vmul.f32 %v1280, %v1437
  %v1442 = vmul.f32 %v1290, %v1198
  %v1443 = vmul.f32 %v1294, %v1199
  %v1444 = vadd.f32 %v1440, %v1442
  %v1445 = vadd.f32 %v1441, %v1443
  %v1446 = vmul.f32 %v1302, %v960
  %v1447 = vmul.f32 %v1306, %v961
  %v1448 = vadd.f32 %v1444, %v1446
  %v1449 = vadd.f32 %v1445, %v1447
  %v1450 = vmul.f32 %v1314, %v722
  %v1451 = vmul.f32 %v1318, %v723
  %v1452 = vadd.f32 %v1448, %v1450
  %v1453 = vadd.f32 %v1449, %v1451
  %v1456 = vrot.slane %v1452, 7
  %v1457 = vrot.slane %v1453, 7
  %v1460 = vadd.f32 %v179, %v1456
  %v1461 = vadd.f32 %v255, %v1457
  %v1462 = vmul.f32 %v1460, %v263
  %v1463 = vmul.f32 %v1461, %v263
  %v1464 = vtanh.pop %v1462
  %v1465 = vtanh.pop %v1463
  %v1466 = vmul.f32 %v1464, 0.5
  %v1467 = vmul.f32 %v1465, 0.5
  %v1468 = vadd.f32 %v1466, 0.5
  %v1469 = vadd.f32 %v1467, 0.5
  %v1472 = vrot.slane %v1258, 7
  %v1473 = vrot.slane %v1259, 7
  %v1476 = vmul.f32 %v1468, %v1472
  %v1477 = vmul.f32 %v1469, %v1473
  %1480 = vrot.lane.b32.xlu0 %v1464, 120
  %v1481 = vpop.permute.xlu0 %1480
  %1482 = vrot.lane.b32.xlu0 %v1465, 120
  %v1483 = vpop.permute.xlu0 %1482
  %v1486 = vmul.f32 %v1468, %v1481
  %v1487 = vmul.f32 %v1469, %v1483
  %1490 = vrot.lane.b32.xlu0 %v1486, 4
  %v1491 = vpop.permute.xlu0 %1490
  %1492 = vrot.lane.b32.xlu0 %v1487, 4
  %v1493 = vpop.permute.xlu0 %1492
  %v1496 = vadd.f32 %v1476, %v1491
  %v1497 = vadd.f32 %v1477, %v1493
  %v1498 = vtanh.pop %v1496
  %v1499 = vtanh.pop %v1497
  %1502 = vrot.lane.b32.xlu0 %v1498, 8
  %v1503 = vpop.permute.xlu0 %1502
  %1504 = vrot.lane.b32.xlu0 %v1499, 8
  %v1505 = vpop.permute.xlu0 %1504
  %v1508 = vmul.f32 %v1468, %v1503
  %v1509 = vmul.f32 %v1469, %v1505
  %1511 = vset.pattern.permute.xlu0 12
  %1512 = vperm.xlu0 %1511, %v1508
  %v1513 = vpop.permute.xlu0 %1512
  %1516 = vset.pattern.permute.xlu0 12
  %1517 = vperm.xlu0 %1516, %v1509
  %v1518 = vpop.permute.xlu0 %1517
  %v1520 = vmul.f32 %v1513, %v384
  %v1521 = vmul.f32 %v1518, %v385
  %1522 = vset.pattern.permute.xlu0 13
  %1523 = vperm.xlu0 %1522, %v1508
  %v1524 = vpop.permute.xlu0 %1523
  %1526 = vset.pattern.permute.xlu0 13
  %1527 = vperm.xlu0 %1526, %v1509
  %v1528 = vpop.permute.xlu0 %1527
  %v1530 = vmul.f32 %v1524, %v1282
  %v1531 = vmul.f32 %v1528, %v1283
  %v1532 = vadd.f32 %v1520, %v1530
  %v1533 = vadd.f32 %v1521, %v1531
  %1534 = vset.pattern.permute.xlu0 14
  %1535 = vperm.xlu0 %1534, %v1508
  %v1536 = vpop.permute.xlu0 %1535
  %1538 = vset.pattern.permute.xlu0 14
  %1539 = vperm.xlu0 %1538, %v1509
  %v1540 = vpop.permute.xlu0 %1539
  %v1542 = vmul.f32 %v1536, %v1044
  %v1543 = vmul.f32 %v1540, %v1045
  %v1544 = vadd.f32 %v1532, %v1542
  %v1545 = vadd.f32 %v1533, %v1543
  %1546 = vset.pattern.permute.xlu0 15
  %1547 = vperm.xlu0 %1546, %v1508
  %v1548 = vpop.permute.xlu0 %1547
  %1550 = vset.pattern.permute.xlu0 15
  %1551 = vperm.xlu0 %1550, %v1509
  %v1552 = vpop.permute.xlu0 %1551
  %v1554 = vmul.f32 %v1548, %v806
  %v1555 = vmul.f32 %v1552, %v807
  %v1556 = vadd.f32 %v1544, %v1554
  %v1557 = vadd.f32 %v1545, %v1555
  %v1558 = vrot.slane %v63, 3
  %v1560 = vadd.f32 %v1556, %v1558
  %v1561 = vadd.f32 %v1557, %v1324
  %1563 = vset.pattern.permute.xlu0 12
  %1564 = vperm.xlu0 %1563, %v1434
  %v1565 = vpop.permute.xlu0 %1564
  %1568 = vset.pattern.permute.xlu0 12
  %1569 = vperm.xlu0 %1568, %v1435
  %v1570 = vpop.permute.xlu0 %1569
  %v1572 = vrot.slane %v61, 4
  %v1573 = vrot.slane %v62, 4
  %v1576 = vmul.f32 %v1565, %v1572
  %v1577 = vmul.f32 %v1570, %v1573
  %1578 = vset.pattern.permute.xlu0 13
  %1579 = vperm.xlu0 %1578, %v1434
  %v1580 = vpop.permute.xlu0 %1579
  %1582 = vset.pattern.permute.xlu0 13
  %1583 = vperm.xlu0 %1582, %v1435
  %v1584 = vpop.permute.xlu0 %1583
  %v1586 = vmul.f32 %v1580, %v1338
  %v1587 = vmul.f32 %v1584, %v1339
  %v1588 = vadd.f32 %v1576, %v1586
  %v1589 = vadd.f32 %v1577, %v1587
  %1590 = vset.pattern.permute.xlu0 14
  %1591 = vperm.xlu0 %1590, %v1434
  %v1592 = vpop.permute.xlu0 %1591
  %1594 = vset.pattern.permute.xlu0 14
  %1595 = vperm.xlu0 %1594, %v1435
  %v1596 = vpop.permute.xlu0 %1595
  %v1598 = vmul.f32 %v1592, %v1100
  %v1599 = vmul.f32 %v1596, %v1101
  %v1600 = vadd.f32 %v1588, %v1598
  %v1601 = vadd.f32 %v1589, %v1599
  %1602 = vset.pattern.permute.xlu0 15
  %1603 = vperm.xlu0 %1602, %v1434
  %v1604 = vpop.permute.xlu0 %1603
  %1606 = vset.pattern.permute.xlu0 15
  %1607 = vperm.xlu0 %1606, %v1435
  %v1608 = vpop.permute.xlu0 %1607
  %v1610 = vmul.f32 %v1604, %v862
  %v1611 = vmul.f32 %v1608, %v863
  %v1612 = vadd.f32 %v1600, %v1610
  %v1613 = vadd.f32 %v1601, %v1611
  %v1616 = vrot.slane %v1612, 7
  %v1617 = vrot.slane %v1613, 7
  %v1620 = vadd.f32 %v1560, %v1616
  %v1621 = vadd.f32 %v1561, %v1617
  %v1622 = vmul.f32 %v1620, %v263
  %v1623 = vmul.f32 %v1621, %v263
  %v1624 = vtanh.pop %v1622
  %v1625 = vtanh.pop %v1623
  %v1626 = vmul.f32 %v1624, 0.5
  %v1627 = vmul.f32 %v1625, 0.5
  %v1628 = vadd.f32 %v1626, 0.5
  %v1629 = vadd.f32 %v1627, 0.5
  %v1632 = vrot.slane %v1422, 7
  %v1633 = vrot.slane %v1423, 7
  %v1636 = vmul.f32 %v1628, %v1632
  %v1637 = vmul.f32 %v1629, %v1633
  %1640 = vrot.lane.b32.xlu0 %v1624, 120
  %v1641 = vpop.permute.xlu0 %1640
  %1642 = vrot.lane.b32.xlu0 %v1625, 120
  %v1643 = vpop.permute.xlu0 %1642
  %v1646 = vmul.f32 %v1628, %v1641
  %v1647 = vmul.f32 %v1629, %v1643
  %1650 = vrot.lane.b32.xlu0 %v1646, 4
  %v1651 = vpop.permute.xlu0 %1650
  %1652 = vrot.lane.b32.xlu0 %v1647, 4
  %v1653 = vpop.permute.xlu0 %1652
  %v1656 = vadd.f32 %v1636, %v1651
  %v1657 = vadd.f32 %v1637, %v1653
  %v1658 = vtanh.pop %v1656
  %v1659 = vtanh.pop %v1657
  %1662 = vrot.lane.b32.xlu0 %v1658, 8
  %v1663 = vpop.permute.xlu0 %1662
  %1664 = vrot.lane.b32.xlu0 %v1659, 8
  %v1665 = vpop.permute.xlu0 %1664
  %v1668 = vmul.f32 %v1628, %v1663
  %v1669 = vmul.f32 %v1629, %v1665
  %v1670 = vmul.f32 %v1513, %v484
  %v1671 = vmul.f32 %v1518, %v485
  %v1672 = vmul.f32 %v1524, %v1436
  %v1673 = vmul.f32 %v1528, %v1437
  %v1674 = vadd.f32 %v1670, %v1672
  %v1675 = vadd.f32 %v1671, %v1673
  %v1676 = vmul.f32 %v1536, %v1198
  %v1677 = vmul.f32 %v1540, %v1199
  %v1678 = vadd.f32 %v1674, %v1676
  %v1679 = vadd.f32 %v1675, %v1677
  %v1680 = vmul.f32 %v1548, %v960
  %v1681 = vmul.f32 %v1552, %v961
  %v1682 = vadd.f32 %v1678, %v1680
  %v1683 = vadd.f32 %v1679, %v1681
  %v1686 = vrot.slane %v1682, 7
  %v1687 = vrot.slane %v1683, 7
  %v1690 = vadd.f32 %v179, %v1686
  %v1691 = vadd.f32 %v255, %v1687
  %v1692 = vmul.f32 %v1690, %v263
  %v1693 = vmul.f32 %v1691, %v263
  %v1694 = vtanh.pop %v1692
  %v1695 = vtanh.pop %v1693
  %v1696 = vmul.f32 %v1694, 0.5
  %v1697 = vmul.f32 %v1695, 0.5
  %v1698 = vadd.f32 %v1696, 0.5
  %v1699 = vadd.f32 %v1697, 0.5
  %v1702 = vrot.slane %v1496, 7
  %v1703 = vrot.slane %v1497, 7
  %v1706 = vmul.f32 %v1698, %v1702
  %v1707 = vmul.f32 %v1699, %v1703
  %1710 = vrot.lane.b32.xlu0 %v1694, 120
  %v1711 = vpop.permute.xlu0 %1710
  %1712 = vrot.lane.b32.xlu0 %v1695, 120
  %v1713 = vpop.permute.xlu0 %1712
  %v1716 = vmul.f32 %v1698, %v1711
  %v1717 = vmul.f32 %v1699, %v1713
  %1720 = vrot.lane.b32.xlu0 %v1716, 4
  %v1721 = vpop.permute.xlu0 %1720
  %1722 = vrot.lane.b32.xlu0 %v1717, 4
  %v1723 = vpop.permute.xlu0 %1722
  %v1726 = vadd.f32 %v1706, %v1721
  %v1727 = vadd.f32 %v1707, %v1723
  %v1728 = vtanh.pop %v1726
  %v1729 = vtanh.pop %v1727
  %1732 = vrot.lane.b32.xlu0 %v1728, 8
  %v1733 = vpop.permute.xlu0 %1732
  %1734 = vrot.lane.b32.xlu0 %v1729, 8
  %v1735 = vpop.permute.xlu0 %1734
  %v1738 = vmul.f32 %v1698, %v1733
  %v1739 = vmul.f32 %v1699, %v1735
  %1741 = vset.pattern.permute.xlu0 12
  %1742 = vperm.xlu0 %1741, %v1738
  %v1743 = vpop.permute.xlu0 %1742
  %1746 = vset.pattern.permute.xlu0 12
  %1747 = vperm.xlu0 %1746, %v1739
  %v1748 = vpop.permute.xlu0 %1747
  %v1750 = vmul.f32 %v1743, %v368
  %v1751 = vmul.f32 %v1748, %v369
  %1752 = vset.pattern.permute.xlu0 13
  %1753 = vperm.xlu0 %1752, %v1738
  %v1754 = vpop.permute.xlu0 %1753
  %1756 = vset.pattern.permute.xlu0 13
  %1757 = vperm.xlu0 %1756, %v1739
  %v1758 = vpop.permute.xlu0 %1757
  %v1760 = vmul.f32 %v1754, %v384
  %v1761 = vmul.f32 %v1758, %v385
  %v1762 = vadd.f32 %v1750, %v1760
  %v1763 = vadd.f32 %v1751, %v1761
  %1764 = vset.pattern.permute.xlu0 14
  %1765 = vperm.xlu0 %1764, %v1738
  %v1766 = vpop.permute.xlu0 %1765
  %1768 = vset.pattern.permute.xlu0 14
  %1769 = vperm.xlu0 %1768, %v1739
  %v1770 = vpop.permute.xlu0 %1769
  %v1772 = vmul.f32 %v1766, %v1282
  %v1773 = vmul.f32 %v1770, %v1283
  %v1774 = vadd.f32 %v1762, %v1772
  %v1775 = vadd.f32 %v1763, %v1773
  %1776 = vset.pattern.permute.xlu0 15
  %1777 = vperm.xlu0 %1776, %v1738
  %v1778 = vpop.permute.xlu0 %1777
  %1780 = vset.pattern.permute.xlu0 15
  %1781 = vperm.xlu0 %1780, %v1739
  %v1782 = vpop.permute.xlu0 %1781
  %v1784 = vmul.f32 %v1778, %v1044
  %v1785 = vmul.f32 %v1782, %v1045
  %v1786 = vadd.f32 %v1774, %v1784
  %v1787 = vadd.f32 %v1775, %v1785
  %v1788 = vrot.slane %v63, 2
  %v1790 = vadd.f32 %v1786, %v1788
  %v1791 = vadd.f32 %v1787, %v1558
  %1793 = vset.pattern.permute.xlu0 12
  %1794 = vperm.xlu0 %1793, %v1668
  %v1795 = vpop.permute.xlu0 %1794
  %1798 = vset.pattern.permute.xlu0 12
  %1799 = vperm.xlu0 %1798, %v1669
  %v1800 = vpop.permute.xlu0 %1799
  %v1802 = vmul.f32 %v1795, %v658
  %v1803 = vmul.f32 %v1800, %v659
  %1804 = vset.pattern.permute.xlu0 13
  %1805 = vperm.xlu0 %1804, %v1668
  %v1806 = vpop.permute.xlu0 %1805
  %1808 = vset.pattern.permute.xlu0 13
  %1809 = vperm.xlu0 %1808, %v1669
  %v1810 = vpop.permute.xlu0 %1809
  %v1812 = vmul.f32 %v1806, %v1572
  %v1813 = vmul.f32 %v1810, %v1573
  %v1814 = vadd.f32 %v1802, %v1812
  %v1815 = vadd.f32 %v1803, %v1813
  %1816 = vset.pattern.permute.xlu0 14
  %1817 = vperm.xlu0 %1816, %v1668
  %v1818 = vpop.permute.xlu0 %1817
  %1820 = vset.pattern.permute.xlu0 14
  %1821 = vperm.xlu0 %1820, %v1669
  %v1822 = vpop.permute.xlu0 %1821
  %v1824 = vmul.f32 %v1818, %v1338
  %v1825 = vmul.f32 %v1822, %v1339
  %v1826 = vadd.f32 %v1814, %v1824
  %v1827 = vadd.f32 %v1815, %v1825
  %1828 = vset.pattern.permute.xlu0 15
  %1829 = vperm.xlu0 %1828, %v1668
  %v1830 = vpop.permute.xlu0 %1829
  %1832 = vset.pattern.permute.xlu0 15
  %1833 = vperm.xlu0 %1832, %v1669
  %v1834 = vpop.permute.xlu0 %1833
  %v1836 = vmul.f32 %v1830, %v1100
  %v1837 = vmul.f32 %v1834, %v1101
  %v1838 = vadd.f32 %v1826, %v1836
  %v1839 = vadd.f32 %v1827, %v1837
  %v1842 = vrot.slane %v1838, 7
  %v1843 = vrot.slane %v1839, 7
  %v1846 = vadd.f32 %v1790, %v1842
  %v1847 = vadd.f32 %v1791, %v1843
  %v1848 = vmul.f32 %v1846, %v263
  %v1849 = vmul.f32 %v1847, %v263
  %v1850 = vtanh.pop %v1848
  %v1851 = vtanh.pop %v1849
  %v1852 = vmul.f32 %v1850, 0.5
  %v1853 = vmul.f32 %v1851, 0.5
  %v1854 = vadd.f32 %v1852, 0.5
  %v1855 = vadd.f32 %v1853, 0.5
  %v1858 = vrot.slane %v1656, 7
  %v1859 = vrot.slane %v1657, 7
  %v1862 = vmul.f32 %v1854, %v1858
  %v1863 = vmul.f32 %v1855, %v1859
  %1866 = vrot.lane.b32.xlu0 %v1850, 120
  %v1867 = vpop.permute.xlu0 %1866
  %1868 = vrot.lane.b32.xlu0 %v1851, 120
  %v1869 = vpop.permute.xlu0 %1868
  %v1872 = vmul.f32 %v1854, %v1867
  %v1873 = vmul.f32 %v1855, %v1869
  %1876 = vrot.lane.b32.xlu0 %v1872, 4
  %v1877 = vpop.permute.xlu0 %1876
  %1878 = vrot.lane.b32.xlu0 %v1873, 4
  %v1879 = vpop.permute.xlu0 %1878
  %v1882 = vadd.f32 %v1862, %v1877
  %v1883 = vadd.f32 %v1863, %v1879
  %v1884 = vtanh.pop %v1882
  %v1885 = vtanh.pop %v1883
  %1888 = vrot.lane.b32.xlu0 %v1884, 8
  %v1889 = vpop.permute.xlu0 %1888
  %1890 = vrot.lane.b32.xlu0 %v1885, 8
  %v1891 = vpop.permute.xlu0 %1890
  %v1894 = vmul.f32 %v1854, %v1889
  %v1895 = vmul.f32 %v1855, %v1891
  %v1896 = vmul.f32 %v1743, %v476
  %v1897 = vmul.f32 %v1748, %v477
  %v1898 = vmul.f32 %v1754, %v484
  %v1899 = vmul.f32 %v1758, %v485
  %v1900 = vadd.f32 %v1896, %v1898
  %v1901 = vadd.f32 %v1897, %v1899
  %v1902 = vmul.f32 %v1766, %v1436
  %v1903 = vmul.f32 %v1770, %v1437
  %v1904 = vadd.f32 %v1900, %v1902
  %v1905 = vadd.f32 %v1901, %v1903
  %v1906 = vmul.f32 %v1778, %v1198
  %v1907 = vmul.f32 %v1782, %v1199
  %v1908 = vadd.f32 %v1904, %v1906
  %v1909 = vadd.f32 %v1905, %v1907
  %v1912 = vrot.slane %v1908, 7
  %v1913 = vrot.slane %v1909, 7
  %v1916 = vadd.f32 %v179, %v1912
  %v1917 = vadd.f32 %v255, %v1913
  %v1918 = vmul.f32 %v1916, %v263
  %v1919 = vmul.f32 %v1917, %v263
  %v1920 = vtanh.pop %v1918
  %v1921 = vtanh.pop %v1919
  %v1922 = vmul.f32 %v1920, 0.5
  %v1923 = vmul.f32 %v1921, 0.5
  %v1924 = vadd.f32 %v1922, 0.5
  %v1925 = vadd.f32 %v1923, 0.5
  %v1928 = vrot.slane %v1726, 7
  %v1929 = vrot.slane %v1727, 7
  %v1932 = vmul.f32 %v1924, %v1928
  %v1933 = vmul.f32 %v1925, %v1929
  %1936 = vrot.lane.b32.xlu0 %v1920, 120
  %v1937 = vpop.permute.xlu0 %1936
  %1938 = vrot.lane.b32.xlu0 %v1921, 120
  %v1939 = vpop.permute.xlu0 %1938
  %v1942 = vmul.f32 %v1924, %v1937
  %v1943 = vmul.f32 %v1925, %v1939
  %1946 = vrot.lane.b32.xlu0 %v1942, 4
  %v1947 = vpop.permute.xlu0 %1946
  %1948 = vrot.lane.b32.xlu0 %v1943, 4
  %v1949 = vpop.permute.xlu0 %1948
  %v1952 = vadd.f32 %v1932, %v1947
  %v1953 = vadd.f32 %v1933, %v1949
  %v1954 = vtanh.pop %v1952
  %v1955 = vtanh.pop %v1953
  %1958 = vrot.lane.b32.xlu0 %v1954, 8
  %v1959 = vpop.permute.xlu0 %1958
  %1960 = vrot.lane.b32.xlu0 %v1955, 8
  %v1961 = vpop.permute.xlu0 %1960
  %v1964 = vmul.f32 %v1924, %v1959
  %v1965 = vmul.f32 %v1925, %v1961
  %1967 = vset.pattern.permute.xlu0 12
  %1968 = vperm.xlu0 %1967, %v1964
  %v1969 = vpop.permute.xlu0 %1968
  %1972 = vset.pattern.permute.xlu0 12
  %1973 = vperm.xlu0 %1972, %v1965
  %v1974 = vpop.permute.xlu0 %1973
  %v1976 = vmul.f32 %v1969, %v352
  %v1977 = vmul.f32 %v1974, %v353
  %1978 = vset.pattern.permute.xlu0 13
  %1979 = vperm.xlu0 %1978, %v1964
  %v1980 = vpop.permute.xlu0 %1979
  %1982 = vset.pattern.permute.xlu0 13
  %1983 = vperm.xlu0 %1982, %v1965
  %v1984 = vpop.permute.xlu0 %1983
  %v1986 = vmul.f32 %v1980, %v368
  %v1987 = vmul.f32 %v1984, %v369
  %v1988 = vadd.f32 %v1976, %v1986
  %v1989 = vadd.f32 %v1977, %v1987
  %1990 = vset.pattern.permute.xlu0 14
  %1991 = vperm.xlu0 %1990, %v1964
  %v1992 = vpop.permute.xlu0 %1991
  %1994 = vset.pattern.permute.xlu0 14
  %1995 = vperm.xlu0 %1994, %v1965
  %v1996 = vpop.permute.xlu0 %1995
  %v1998 = vmul.f32 %v1992, %v384
  %v1999 = vmul.f32 %v1996, %v385
  %v2000 = vadd.f32 %v1988, %v1998
  %v2001 = vadd.f32 %v1989, %v1999
  %2002 = vset.pattern.permute.xlu0 15
  %2003 = vperm.xlu0 %2002, %v1964
  %v2004 = vpop.permute.xlu0 %2003
  %2006 = vset.pattern.permute.xlu0 15
  %2007 = vperm.xlu0 %2006, %v1965
  %v2008 = vpop.permute.xlu0 %2007
  %v2010 = vmul.f32 %v2004, %v1282
  %v2011 = vmul.f32 %v2008, %v1283
  %v2012 = vadd.f32 %v2000, %v2010
  %v2013 = vadd.f32 %v2001, %v2011
  %v2014 = vadd.f32 %v2012, %v393
  %v2015 = vadd.f32 %v2013, %v1788
  %2017 = vset.pattern.permute.xlu0 12
  %2018 = vperm.xlu0 %2017, %v1894
  %v2019 = vpop.permute.xlu0 %2018
  %2022 = vset.pattern.permute.xlu0 12
  %2023 = vperm.xlu0 %2022, %v1895
  %v2024 = vpop.permute.xlu0 %2023
  %v2026 = vmul.f32 %v2019, %v642
  %v2027 = vmul.f32 %v2024, %v643
  %2028 = vset.pattern.permute.xlu0 13
  %2029 = vperm.xlu0 %2028, %v1894
  %v2030 = vpop.permute.xlu0 %2029
  %2032 = vset.pattern.permute.xlu0 13
  %2033 = vperm.xlu0 %2032, %v1895
  %v2034 = vpop.permute.xlu0 %2033
  %v2036 = vmul.f32 %v2030, %v658
  %v2037 = vmul.f32 %v2034, %v659
  %v2038 = vadd.f32 %v2026, %v2036
  %v2039 = vadd.f32 %v2027, %v2037
  %2040 = vset.pattern.permute.xlu0 14
  %2041 = vperm.xlu0 %2040, %v1894
  %v2042 = vpop.permute.xlu0 %2041
  %2044 = vset.pattern.permute.xlu0 14
  %2045 = vperm.xlu0 %2044, %v1895
  %v2046 = vpop.permute.xlu0 %2045
  %v2048 = vmul.f32 %v2042, %v1572
  %v2049 = vmul.f32 %v2046, %v1573
  %v2050 = vadd.f32 %v2038, %v2048
  %v2051 = vadd.f32 %v2039, %v2049
  %2052 = vset.pattern.permute.xlu0 15
  %2053 = vperm.xlu0 %2052, %v1894
  %v2054 = vpop.permute.xlu0 %2053
  %2056 = vset.pattern.permute.xlu0 15
  %2057 = vperm.xlu0 %2056, %v1895
  %v2058 = vpop.permute.xlu0 %2057
  %v2060 = vmul.f32 %v2054, %v1338
  %v2061 = vmul.f32 %v2058, %v1339
  %v2062 = vadd.f32 %v2050, %v2060
  %v2063 = vadd.f32 %v2051, %v2061
  %v2066 = vrot.slane %v2062, 7
  %v2067 = vrot.slane %v2063, 7
  %v2070 = vadd.f32 %v2014, %v2066
  %v2071 = vadd.f32 %v2015, %v2067
  %v2072 = vmul.f32 %v2070, %v263
  %v2073 = vmul.f32 %v2071, %v263
  %v2074 = vtanh.pop %v2072
  %v2075 = vtanh.pop %v2073
  %v2076 = vmul.f32 %v2074, 0.5
  %v2077 = vmul.f32 %v2075, 0.5
  %v2078 = vadd.f32 %v2076, 0.5
  %v2079 = vadd.f32 %v2077, 0.5
  %v2082 = vrot.slane %v1882, 7
  %v2083 = vrot.slane %v1883, 7
  %v2086 = vmul.f32 %v2078, %v2082
  %v2087 = vmul.f32 %v2079, %v2083
  %2090 = vrot.lane.b32.xlu0 %v2074, 120
  %v2091 = vpop.permute.xlu0 %2090
  %2092 = vrot.lane.b32.xlu0 %v2075, 120
  %v2093 = vpop.permute.xlu0 %2092
  %v2096 = vmul.f32 %v2078, %v2091
  %v2097 = vmul.f32 %v2079, %v2093
  %2100 = vrot.lane.b32.xlu0 %v2096, 4
  %v2101 = vpop.permute.xlu0 %2100
  %2102 = vrot.lane.b32.xlu0 %v2097, 4
  %v2103 = vpop.permute.xlu0 %2102
  %v2106 = vadd.f32 %v2086, %v2101
  %v2107 = vadd.f32 %v2087, %v2103
  %v2108 = vtanh.pop %v2106
  %v2109 = vtanh.pop %v2107
  %2112 = vrot.lane.b32.xlu0 %v2108, 8
  %v2113 = vpop.permute.xlu0 %2112
  %2114 = vrot.lane.b32.xlu0 %v2109, 8
  %v2115 = vpop.permute.xlu0 %2114
  %v2118 = vmul.f32 %v2078, %v2113
  %v2119 = vmul.f32 %v2079, %v2115
  %vm2120 = vcmask 1040384
  %v2121 = vsel %vm2120, %v462, %v720
  %v2122 = vsel %vm2120, %v463, %v721
  %vm2123 = vcmask 1041408
  %v2124 = vsel %vm2123, %v2121, %v958
  %v2125 = vsel %vm2123, %v2122, %v959
  %vm2126 = vcmask 1042432
  %v2127 = vsel %vm2126, %v2124, %v1196
  %v2128 = vsel %vm2126, %v2125, %v1197
  %v2129 = vsel %vm108, %v2127, %v1434
  %v2130 = vsel %vm108, %v2128, %v1435
  %vm2131 = vcmask 1044480
  %v2132 = vsel %vm2131, %v2129, %v1668
  %v2133 = vsel %vm2131, %v2130, %v1669
  %vm2134 = vcmask 1045504
  %v2135 = vsel %vm2134, %v2132, %v1894
  %v2136 = vsel %vm2134, %v2133, %v1895
  %vm2137 = vcmask 1046528
  %v2138 = vsel %vm2137, %v2135, %v2118
  %v2139 = vsel %vm2137, %v2136, %v2119
  %v2142 = vunpack.c.l.s4 1966171168
  %v2143 = vunpack.c.0.s8 %v2142
  %v2144 = vlaneseq
  %v2145 = vshrl.u32 %v2144, 7
  %v2146 = vsub.s32 %v2143, %v2145
  %v2147 = vrot.slane %v64, %v2146
  %v2148 = vcombine.high %v2147, %v2147
  %v2150 = vunpack.c.l.s4 1966171168
  %v2151 = vunpack.c.0.s8 %v2150
  %v2152 = vlaneseq
  %v2153 = vshrl.u32 %v2152, 7
  %v2154 = vsub.s32 %v2151, %v2153
  %v2155 = vrot.slane %v2147, %v2154
  %v2157 = vunpack.c.l.s4 1966171168
  %v2158 = vunpack.c.0.s8 %v2157
  %v2159 = vlaneseq
  %v2160 = vshrl.u32 %v2159, 7
  %v2161 = vsub.s32 %v2158, %v2160
  %v2162 = vrot.slane %v2148, %v2161
  %v2163 = vlaneseq
  %v2164 = vshrl.u32 %v2163, 7
  %v2165 = vsub.s32 0, %v2164
  %v2166 = vrot.slane %v2155, %v2165
  %v2167 = vlaneseq
  %v2168 = vshrl.u32 %v2167, 7
  %v2169 = vsub.s32 0, %v2168
  %v2170 = vrot.slane %v2162, %v2169
  %2171 = vrot.lane.b32.xlu0 %v2166, 12
  %v2172 = vpop.permute.xlu0 %2171
  %2173 = vrot.lane.b32.xlu0 %v2170, 12
  %v2174 = vpop.permute.xlu0 %2173
  %v2177 = vmul.f32 %v2138, %v2172
  %v2178 = vmul.f32 %v2139, %v2174
  %2181 = vrot.lane.b32.xlu0 %v2177, 116
  %v2182 = vpop.permute.xlu0 %2181
  %2183 = vrot.lane.b32.xlu0 %v2178, 116
  %v2184 = vpop.permute.xlu0 %2183
  %vm2187 = vcmask 31744
  %v2188 = vsel %vm2187, %v2182, 0.0
  %2189 = vadd.xlane.f32.xlu0 %v2188
  %v2190 = vpop.xlane.xlu0 %2189
  %v2191 = vsel %vm2187, %v2184, 0.0
  %2192 = vadd.xlane.f32.xlu0 %v2191
  %v2193 = vpop.xlane.xlu0 %2192
  %v2196 = vlaneseq
  %v2197 = vshrl.u32 %v2196, 7
  %v2198 = vsub.s32 0, %v2197
  %v2199 = vrot.slane %v65, %v2198
  %v2200 = vlaneseq
  %v2201 = vshrl.u32 %v2200, 7
  %v2202 = vsub.s32 0, %v2201
  %v2203 = vrot.slane %v66, %v2202
  %v2206 = vadd.f32 %v2190, %v2199
  %v2207 = vadd.f32 %v2193, %v2203
  %v2210 = vlaneseq
  %v2211 = vshrl.u32 %v2210, 7
  %v2212 = vsub.s32 0, %v2211
  %v2213 = vrot.slane %v67, %v2212
  %v2214 = vlaneseq
  %v2215 = vshrl.u32 %v2214, 7
  %v2216 = vsub.s32 0, %v2215
  %v2217 = vrot.slane %v68, %v2216
  %v2220 = vmul.f32 %v2206, %v2213
  %v2221 = vmul.f32 %v2207, %v2217
  %v2224 = vlaneseq
  %v2225 = vshrl.u32 %v2224, 7
  %v2226 = vsub.s32 0, %v2225
  %v2227 = vrot.slane %v69, %v2226
  %v2228 = vlaneseq
  %v2229 = vshrl.u32 %v2228, 7
  %v2230 = vsub.s32 0, %v2229
  %v2231 = vrot.slane %v70, %v2230
  %v2234 = vadd.f32 %v2220, %v2227
  %v2235 = vadd.f32 %v2221, %v2231
  %vm2236 = vcmask 7168
  %2237 = vst.msk [vmem:[%s11] sm:$0xff] %vm2236, %v2234
  %2238 = vst.msk [vmem:[%s11 + $0x8] sm:$0xff] %vm2236, %v2235
  // Predicated region
  $region46: #{lstm_forward.1} parent=0 // pred_check
    _
  $region47: #{lstm_forward.1} parent=0 // pred_check_branch
    %2240 = sbr.rel (0) target = $region49
  $region48: #{lstm_forward.1} parent=0 // pred_region
    _
  $region49: #{lstm_forward.1} parent=0 // pred_fallthru
    _
  // Predicated region
  $region50: #{lstm_forward.1} parent=0 // pred_check
    _
  $region51: #{lstm_forward.1} parent=0 // pred_check_branch
    %2242 = sbr.rel (0) target = $region53
  $region52: #{lstm_forward.1} parent=0 // pred_region
    _
  $region53: #{lstm_forward.1} parent=0 // pred_fallthru
    _

</llo_original>
